<compile_context>
chip_gen: v7x
topology: tpu7x:2x2x1
jax: 0.10.0
libtpu: 0.0.40
codegen_flags: <defaults>
</compile_context>

<pallas_src>
import jax
import jax.numpy as jnp
import numpy as np
from jax.experimental import pallas as pl
from jax.experimental.pallas import tpu as pltpu

IN_DIM = 360
HID = 200
CNO_OUT, CNO_EXP = 340, 93   # _NetCNO: abs on h[:, :93]
H_OUT, H_EXP = 208, 58       # _NetH:   abs on h[:, :58]

# lane-aligned padded dims (input K dim kept at 360; MXU pads K internally)
HID_PAD, OUT_PAD = 256, 384
_LAYER_DIMS = (IN_DIM, HID_PAD, HID_PAD, HID_PAD, HID_PAD, OUT_PAD)
_NET_ORDER = ("C", "H", "N", "O")
_NET_EXP = (CNO_EXP, H_EXP, CNO_EXP, CNO_EXP)
_MAX_ROW_TILE = 2048


def _round_up(x, m):
    return ((x + m - 1) // m) * m


def _row_tile(n):
    """Row tile: as big as possible (cap 2048), bf16-friendly multiple of 16."""
    return min(_MAX_ROW_TILE, _round_up(max(n, 1), 16))


def _bf16_tanh_ok():
    """bf16 tanh only where the EUP/VPU have a bf16 path (v6e / v7x)."""
    try:
        kind = jax.devices()[0].device_kind.lower()
    except Exception:  # pragma: no cover
        kind = ""
    return ("v6" in kind) or ("v7" in kind)


def _make_kernel(bf16_act):
    def kernel(x_ref, w1, b1, w2, b2, w3, b3, w4, b4, w5, b5, mask_ref, out_ref):
        """One (net, row_tile) step: 5-layer MLP + Tanh, |.| on masked columns.

        Weights/biases/masks hold all 4 nets (VMEM-resident); select by net id.
        """
        net = pl.program_id(0)
        h = x_ref[0]                                               # (tm, 360) bf16
        for w, b in ((w1, b1), (w2, b2), (w3, b3), (w4, b4)):
            z = jnp.dot(h, w[net], preferred_element_type=jnp.float32) + b[net]
            if bf16_act:
                h = jnp.tanh(z.astype(jnp.bfloat16))               # bf16 EUP
            else:
                h = jnp.tanh(z).astype(jnp.bfloat16)               # f32 EUP (v5e)
        h = jnp.dot(h, w5[net], preferred_element_type=jnp.float32) + b5[net]
        # torch.cat([abs(h[:, :n_exp]), h[:, n_exp:]], 1) via precomputed column mask
        h = jnp.where(mask_ref[net] > 0.0, jnp.abs(h), h)
        out_ref[0] = h.astype(out_ref.dtype)                       # bf16 store
    return kernel


def pack_params(params):
    """Stack/pad the four nets' weights into lane-aligned bf16 slabs.

    Call ONCE (outside the per-call hot path) and reuse."""
    Ws, Bs = [], []
    for li in range(5):
        d_in, d_out = _LAYER_DIMS[li], _LAYER_DIMS[li + 1]
        w_list, b_list = [], []
        for name in _NET_ORDER:
            w = params[name][2 * li]
            b = params[name][2 * li + 1]
            w_list.append(jnp.pad(w, ((0, d_in - w.shape[0]), (0, d_out - w.shape[1]))))
            b_list.append(jnp.pad(b, ((0, 0), (0, d_out - b.shape[1]))))
        Ws.append(jnp.stack(w_list).astype(jnp.bfloat16))          # (4, d_in, d_out)
        Bs.append(jnp.stack(b_list))                               # (4, 1, d_out) f32
    col = jnp.arange(OUT_PAD)[None, :]
    mask = jnp.stack([(col < n).astype(jnp.float32) for n in _NET_EXP])  # (4,1,OUT_PAD)
    return Ws, Bs, mask


def pack_inputs(X_C, X_H, X_N, X_O):
    """Single fused stack + row-pad + bf16 cast (lane dim kept at 360).

    Hoist this into the input producer when running in a loop."""
    b, p, _ = X_C.shape
    N = b * p
    tm = _row_tile(N)
    n_pad = _round_up(N, tm)
    X = jnp.stack([X_C, X_H, X_N, X_O]).reshape(4, N, IN_DIM)
    X = jnp.pad(X, ((0, 0), (0, n_pad - N), (0, 0))).astype(jnp.bfloat16)
    return X, N, b, p


def charge_model_forward_packed(packed_params, X, N, b, p):
    """Fused forward on pre-packed params / inputs (the hot-path entry point)."""
    Ws, Bs, mask = packed_params
    n_pad = X.shape[1]
    tm = _row_tile(N)
    assert n_pad % tm == 0

    kernel = _make_kernel(_bf16_tanh_ok())

    resident = lambda n, r: (0, 0, 0)      # full-array block, fetched once
    in_specs = [pl.BlockSpec((1, tm, IN_DIM), lambda n, r: (n, r, 0))]
    operands = [X]
    for W, B in zip(Ws, Bs):
        in_specs.append(pl.BlockSpec(W.shape, resident))
        in_specs.append(pl.BlockSpec(B.shape, resident))
        operands += [W, B]
    in_specs.append(pl.BlockSpec(mask.shape, resident))
    operands.append(mask)

    flops = 2 * 4 * n_pad * (IN_DIM * HID_PAD + 3 * HID_PAD * HID_PAD + HID_PAD * OUT_PAD)
    trans = 4 * n_pad * 4 * HID_PAD
    w_bytes = (sum(int(np.prod(W.shape)) * 2 for W in Ws)
               + sum(int(np.prod(B.shape)) * 4 for B in Bs)
               + int(np.prod(mask.shape)) * 4)
    bytes_accessed = 4 * n_pad * IN_DIM * 2 + w_bytes + 4 * n_pad * OUT_PAD * 2

    out = pl.pallas_call(
        kernel,
        out_shape=jax.ShapeDtypeStruct((4, n_pad, OUT_PAD), jnp.bfloat16),
        grid=(4, n_pad // tm),                       # (net, row tile)
        in_specs=in_specs,
        out_specs=pl.BlockSpec((1, tm, OUT_PAD), lambda n, r: (n, r, 0)),
        compiler_params=pltpu.CompilerParams(
            dimension_semantics=("parallel", "parallel")),
        cost_estimate=pl.CostEstimate(flops=flops, transcendentals=trans,
                                      bytes_accessed=bytes_accessed),
    )(*operands)

    # slice valid rows/columns and upcast back to f32 (PyTorch interface dtype)
    yC = out[0, :N, :CNO_OUT].astype(jnp.float32).reshape(b, p, CNO_OUT)
    yH = out[1, :N, :H_OUT].astype(jnp.float32).reshape(b, p, H_OUT)
    yN = out[2, :N, :CNO_OUT].astype(jnp.float32).reshape(b, p, CNO_OUT)
    yO = out[3, :N, :CNO_OUT].astype(jnp.float32).reshape(b, p, CNO_OUT)
    return yC, yH, yN, yO


def charge_model_forward(params, X_C, X_H, X_N, X_O):
    """Interface-compatible with ChargeModel.forward.

    For best performance, call pack_params() once and pack_inputs() alongside
    the producer of X, then call charge_model_forward_packed() in the loop.
    """
    packed_params = pack_params(params)
    X, N, b, p = pack_inputs(X_C, X_H, X_N, X_O)
    return charge_model_forward_packed(packed_params, X, N, b, p)


def _init_mlp(key, dims):
    """Deterministic PyTorch-Linear-style init; weights stored as (in, out) f32."""
    params = []
    for i in range(len(dims) - 1):
        key, kw, kb = jax.random.split(key, 3)
        bound = 1.0 / np.sqrt(dims[i])
        w = jax.random.uniform(kw, (dims[i], dims[i + 1]), jnp.float32, -bound, bound)
        b = jax.random.uniform(kb, (1, dims[i + 1]), jnp.float32, -bound, bound)
        params += [w, b]
    return params


def init_charge_model(key):
    kC, kH, kN, kO = jax.random.split(key, 4)
    dims_cno = (IN_DIM, HID, HID, HID, HID, CNO_OUT)
    dims_h = (IN_DIM, HID, HID, HID, HID, H_OUT)
    return {
        "C": _init_mlp(kC, dims_cno),
        "H": _init_mlp(kH, dims_h),
        "N": _init_mlp(kN, dims_cno),
        "O": _init_mlp(kO, dims_cno),
    }


def _ref_mlp(x2d, params, n_exp, bf16_act):
    """Pure-JAX reference emulating the kernel's bf16 / f32-accumulate math."""
    h = x2d.astype(jnp.bfloat16)
    for i in range(0, len(params) - 2, 2):
        z = jnp.dot(h, params[i].astype(jnp.bfloat16),
                    preferred_element_type=jnp.float32) + params[i + 1]
        h = jnp.tanh(z.astype(jnp.bfloat16)) if bf16_act else jnp.tanh(z).astype(jnp.bfloat16)
    h = jnp.dot(h, params[-2].astype(jnp.bfloat16),
                preferred_element_type=jnp.float32) + params[-1]
    h = jnp.concatenate([jnp.abs(h[:, :n_exp]), h[:, n_exp:]], axis=1)
    return h.astype(jnp.bfloat16).astype(jnp.float32)   # kernel stores bf16


if __name__ == "__main__":
    key = jax.random.PRNGKey(0)
    kp, k1, k2, k3, k4 = jax.random.split(key, 5)
    params = init_charge_model(kp)

    b, p = 2, 8  # small shapes: (batch, atoms-per-molecule, 360 features)
    X_C = jax.random.normal(k1, (b, p, IN_DIM), jnp.float32)
    X_H = jax.random.normal(k2, (b, p, IN_DIM), jnp.float32)
    X_N = jax.random.normal(k3, (b, p, IN_DIM), jnp.float32)
    X_O = jax.random.normal(k4, (b, p, IN_DIM), jnp.float32)

    # pack once (hoisted out of the hot path), then run the fused kernel
    packed_params = pack_params(params)
    X_packed, N, _, _ = pack_inputs(X_C, X_H, X_N, X_O)
    outs = charge_model_forward_packed(packed_params, X_packed, N, b, p)
    outs = jax.block_until_ready(outs)

    # correctness check against a pure-JAX reference (same bf16 math path)
    bf16_act = _bf16_tanh_ok()
    refs = (
        _ref_mlp(X_C.reshape(b * p, -1), params["C"], CNO_EXP, bf16_act).reshape(b, p, -1),
        _ref_mlp(X_H.reshape(b * p, -1), params["H"], H_EXP, bf16_act).reshape(b, p, -1),
        _ref_mlp(X_N.reshape(b * p, -1), params["N"], CNO_EXP, bf16_act).reshape(b, p, -1),
        _ref_mlp(X_O.reshape(b * p, -1), params["O"], CNO_EXP, bf16_act).reshape(b, p, -1),
    )
    for got, want in zip(outs, refs):
        np.testing.assert_allclose(np.asarray(got), np.asarray(want),
                                   rtol=2e-2, atol=2e-2)

    # the interface-compatible wrapper must agree bit-for-bit with the packed path
    outs2 = jax.block_until_ready(charge_model_forward(params, X_C, X_H, X_N, X_O))
    for a, c in zip(outs, outs2):
        np.testing.assert_array_equal(np.asarray(a), np.asarray(c))

    assert outs[0].shape == (b, p, CNO_OUT)
    assert outs[1].shape == (b, p, H_OUT)
    assert outs[2].shape == (b, p, CNO_OUT)
    assert outs[3].shape == (b, p, CNO_OUT)
    print("KERNEL_OK")
</pallas_src>

<mosaic_0001>
module attributes {stable_mosaic.version = 11 : i64} {
  func.func @kernel(%arg0: i32, %arg1: i32, %arg2: memref<1x16x360xbf16, #tpu.memory_space<vmem>>, %arg3: memref<4x360x256xbf16, #tpu.memory_space<vmem>>, %arg4: memref<4x1x256xf32, #tpu.memory_space<vmem>>, %arg5: memref<4x256x256xbf16, #tpu.memory_space<vmem>>, %arg6: memref<4x1x256xf32, #tpu.memory_space<vmem>>, %arg7: memref<4x256x256xbf16, #tpu.memory_space<vmem>>, %arg8: memref<4x1x256xf32, #tpu.memory_space<vmem>>, %arg9: memref<4x256x256xbf16, #tpu.memory_space<vmem>>, %arg10: memref<4x1x256xf32, #tpu.memory_space<vmem>>, %arg11: memref<4x256x384xbf16, #tpu.memory_space<vmem>>, %arg12: memref<4x1x384xf32, #tpu.memory_space<vmem>>, %arg13: memref<4x1x384xf32, #tpu.memory_space<vmem>>, %arg14: memref<1x16x384xbf16, #tpu.memory_space<vmem>>) attributes {dimension_semantics = [#tpu.dimension_semantics<parallel>, #tpu.dimension_semantics<parallel>], iteration_bounds = array<i64: 4, 1>, scalar_prefetch = 0 : i64, scratch_operands = 0 : i64, tpu.core_type = #tpu.core_type<tc>, window_params = [{transform_indices = @transform_0, window_bounds = array<i64: 1, 16, 360>}, {pipeline_mode = #tpu.pipeline_mode<synchronous>, transform_indices = @transform_1, window_bounds = array<i64: 4, 360, 256>}, {pipeline_mode = #tpu.pipeline_mode<synchronous>, transform_indices = @transform_2, window_bounds = array<i64: 4, 1, 256>}, {pipeline_mode = #tpu.pipeline_mode<synchronous>, transform_indices = @transform_3, window_bounds = array<i64: 4, 256, 256>}, {pipeline_mode = #tpu.pipeline_mode<synchronous>, transform_indices = @transform_4, window_bounds = array<i64: 4, 1, 256>}, {pipeline_mode = #tpu.pipeline_mode<synchronous>, transform_indices = @transform_5, window_bounds = array<i64: 4, 256, 256>}, {pipeline_mode = #tpu.pipeline_mode<synchronous>, transform_indices = @transform_6, window_bounds = array<i64: 4, 1, 256>}, {pipeline_mode = #tpu.pipeline_mode<synchronous>, transform_indices = @transform_7, window_bounds = array<i64: 4, 256, 256>}, {pipeline_mode = #tpu.pipeline_mode<synchronous>, transform_indices = @transform_8, window_bounds = array<i64: 4, 1, 256>}, {pipeline_mode = #tpu.pipeline_mode<synchronous>, transform_indices = @transform_9, window_bounds = array<i64: 4, 256, 384>}, {pipeline_mode = #tpu.pipeline_mode<synchronous>, transform_indices = @transform_10, window_bounds = array<i64: 4, 1, 384>}, {pipeline_mode = #tpu.pipeline_mode<synchronous>, transform_indices = @transform_11, window_bounds = array<i64: 4, 1, 384>}, {transform_indices = @transform_12, window_bounds = array<i64: 1, 16, 384>}]} {
    %c0 = arith.constant 0 : index
    %c0_0 = arith.constant 0 : index
    %c0_1 = arith.constant 0 : index
    %0 = vector.load %arg2[%c0, %c0_0, %c0_1] : memref<1x16x360xbf16, #tpu.memory_space<vmem>>, vector<1x16x360xbf16>
    %1 = vector.shape_cast %0 : vector<1x16x360xbf16> to vector<16x360xbf16>
    %2 = arith.index_cast %arg0 : i32 to index
    %c0_2 = arith.constant 0 : index
    %c0_3 = arith.constant 0 : index
    %3 = vector.load %arg3[%2, %c0_2, %c0_3] : memref<4x360x256xbf16, #tpu.memory_space<vmem>>, vector<1x360x256xbf16>
    %4 = vector.shape_cast %3 : vector<1x360x256xbf16> to vector<360x256xbf16>
    %cst = arith.constant dense<0.000000e+00> : vector<16x256xf32>
    %5 = tpu.matmul %1, %4, %cst {dimension_numbers = #tpu.dot_dimension_numbers<[1], [0], [0], [1], [0, 0, 1, 1], [], []>} : vector<16x360xbf16>, vector<360x256xbf16>, vector<16x256xf32> -> vector<16x256xf32>
    %6 = arith.index_cast %arg0 : i32 to index
    %c0_4 = arith.constant 0 : index
    %c0_5 = arith.constant 0 : index
    %7 = vector.load %arg4[%6, %c0_4, %c0_5] : memref<4x1x256xf32, #tpu.memory_space<vmem>>, vector<1x1x256xf32>
    %8 = vector.shape_cast %7 : vector<1x1x256xf32> to vector<1x256xf32>
    %9 = vector.broadcast %8 : vector<1x256xf32> to vector<16x256xf32>
    %10 = arith.addf %5, %9 : vector<16x256xf32>
    %11 = math.tanh %10 : vector<16x256xf32>
    %12 = arith.truncf %11 : vector<16x256xf32> to vector<16x256xbf16>
    %13 = arith.index_cast %arg0 : i32 to index
    %c0_6 = arith.constant 0 : index
    %c0_7 = arith.constant 0 : index
    %14 = vector.load %arg5[%13, %c0_6, %c0_7] : memref<4x256x256xbf16, #tpu.memory_space<vmem>>, vector<1x256x256xbf16>
    %15 = vector.shape_cast %14 : vector<1x256x256xbf16> to vector<256x256xbf16>
    %cst_8 = arith.constant dense<0.000000e+00> : vector<16x256xf32>
    %16 = tpu.matmul %12, %15, %cst_8 {dimension_numbers = #tpu.dot_dimension_numbers<[1], [0], [0], [1], [0, 0, 1, 1], [], []>} : vector<16x256xbf16>, vector<256x256xbf16>, vector<16x256xf32> -> vector<16x256xf32>
    %17 = arith.index_cast %arg0 : i32 to index
    %c0_9 = arith.constant 0 : index
    %c0_10 = arith.constant 0 : index
    %18 = vector.load %arg6[%17, %c0_9, %c0_10] : memref<4x1x256xf32, #tpu.memory_space<vmem>>, vector<1x1x256xf32>
    %19 = vector.shape_cast %18 : vector<1x1x256xf32> to vector<1x256xf32>
    %20 = vector.broadcast %19 : vector<1x256xf32> to vector<16x256xf32>
    %21 = arith.addf %16, %20 : vector<16x256xf32>
    %22 = math.tanh %21 : vector<16x256xf32>
    %23 = arith.truncf %22 : vector<16x256xf32> to vector<16x256xbf16>
    %24 = arith.index_cast %arg0 : i32 to index
    %c0_11 = arith.constant 0 : index
    %c0_12 = arith.constant 0 : index
    %25 = vector.load %arg7[%24, %c0_11, %c0_12] : memref<4x256x256xbf16, #tpu.memory_space<vmem>>, vector<1x256x256xbf16>
    %26 = vector.shape_cast %25 : vector<1x256x256xbf16> to vector<256x256xbf16>
    %cst_13 = arith.constant dense<0.000000e+00> : vector<16x256xf32>
    %27 = tpu.matmul %23, %26, %cst_13 {dimension_numbers = #tpu.dot_dimension_numbers<[1], [0], [0], [1], [0, 0, 1, 1], [], []>} : vector<16x256xbf16>, vector<256x256xbf16>, vector<16x256xf32> -> vector<16x256xf32>
    %28 = arith.index_cast %arg0 : i32 to index
    %c0_14 = arith.constant 0 : index
    %c0_15 = arith.constant 0 : index
    %29 = vector.load %arg8[%28, %c0_14, %c0_15] : memref<4x1x256xf32, #tpu.memory_space<vmem>>, vector<1x1x256xf32>
    %30 = vector.shape_cast %29 : vector<1x1x256xf32> to vector<1x256xf32>
    %31 = vector.broadcast %30 : vector<1x256xf32> to vector<16x256xf32>
    %32 = arith.addf %27, %31 : vector<16x256xf32>
    %33 = math.tanh %32 : vector<16x256xf32>
    %34 = arith.truncf %33 : vector<16x256xf32> to vector<16x256xbf16>
    %35 = arith.index_cast %arg0 : i32 to index
    %c0_16 = arith.constant 0 : index
    %c0_17 = arith.constant 0 : index
    %36 = vector.load %arg9[%35, %c0_16, %c0_17] : memref<4x256x256xbf16, #tpu.memory_space<vmem>>, vector<1x256x256xbf16>
    %37 = vector.shape_cast %36 : vector<1x256x256xbf16> to vector<256x256xbf16>
    %cst_18 = arith.constant dense<0.000000e+00> : vector<16x256xf32>
    %38 = tpu.matmul %34, %37, %cst_18 {dimension_numbers = #tpu.dot_dimension_numbers<[1], [0], [0], [1], [0, 0, 1, 1], [], []>} : vector<16x256xbf16>, vector<256x256xbf16>, vector<16x256xf32> -> vector<16x256xf32>
    %39 = arith.index_cast %arg0 : i32 to index
    %c0_19 = arith.constant 0 : index
    %c0_20 = arith.constant 0 : index
    %40 = vector.load %arg10[%39, %c0_19, %c0_20] : memref<4x1x256xf32, #tpu.memory_space<vmem>>, vector<1x1x256xf32>
    %41 = vector.shape_cast %40 : vector<1x1x256xf32> to vector<1x256xf32>
    %42 = vector.broadcast %41 : vector<1x256xf32> to vector<16x256xf32>
    %43 = arith.addf %38, %42 : vector<16x256xf32>
    %44 = math.tanh %43 : vector<16x256xf32>
    %45 = arith.truncf %44 : vector<16x256xf32> to vector<16x256xbf16>
    %46 = arith.index_cast %arg0 : i32 to index
    %c0_21 = arith.constant 0 : index
    %c0_22 = arith.constant 0 : index
    %47 = vector.load %arg11[%46, %c0_21, %c0_22] : memref<4x256x384xbf16, #tpu.memory_space<vmem>>, vector<1x256x384xbf16>
    %48 = vector.shape_cast %47 : vector<1x256x384xbf16> to vector<256x384xbf16>
    %cst_23 = arith.constant dense<0.000000e+00> : vector<16x384xf32>
    %49 = tpu.matmul %45, %48, %cst_23 {dimension_numbers = #tpu.dot_dimension_numbers<[1], [0], [0], [1], [0, 0, 1, 1], [], []>} : vector<16x256xbf16>, vector<256x384xbf16>, vector<16x384xf32> -> vector<16x384xf32>
    %50 = arith.index_cast %arg0 : i32 to index
    %c0_24 = arith.constant 0 : index
    %c0_25 = arith.constant 0 : index
    %51 = vector.load %arg12[%50, %c0_24, %c0_25] : memref<4x1x384xf32, #tpu.memory_space<vmem>>, vector<1x1x384xf32>
    %52 = vector.shape_cast %51 : vector<1x1x384xf32> to vector<1x384xf32>
    %53 = vector.broadcast %52 : vector<1x384xf32> to vector<16x384xf32>
    %54 = arith.addf %49, %53 : vector<16x384xf32>
    %55 = arith.index_cast %arg0 : i32 to index
    %c0_26 = arith.constant 0 : index
    %c0_27 = arith.constant 0 : index
    %56 = vector.load %arg13[%55, %c0_26, %c0_27] : memref<4x1x384xf32, #tpu.memory_space<vmem>>, vector<1x1x384xf32>
    %57 = vector.shape_cast %56 : vector<1x1x384xf32> to vector<1x384xf32>
    %cst_28 = arith.constant 0.000000e+00 : f32
    %58 = vector.broadcast %cst_28 : f32 to vector<1x384xf32>
    %59 = arith.cmpf ogt, %57, %58 : vector<1x384xf32>
    %60 = math.absf %54 : vector<16x384xf32>
    %61 = vector.shape_cast %59 : vector<1x384xi1> to vector<1x384xi1>
    %62 = vector.broadcast %61 : vector<1x384xi1> to vector<16x384xi1>
    %63 = arith.select %62, %60, %54 : vector<16x384xi1>, vector<16x384xf32>
    %64 = arith.truncf %63 : vector<16x384xf32> to vector<16x384xbf16>
    %c0_29 = arith.constant 0 : index
    %c0_30 = arith.constant 0 : index
    %c0_31 = arith.constant 0 : index
    %65 = vector.load %arg14[%c0_29, %c0_30, %c0_31] : memref<1x16x384xbf16, #tpu.memory_space<vmem>>, vector<1x16x384xbf16>
    %66 = vector.shape_cast %65 : vector<1x16x384xbf16> to vector<16x384xbf16>
    %67 = vector.shape_cast %64 : vector<16x384xbf16> to vector<1x16x384xbf16>
    tpu.vector_store %arg14[%c0_29, %c0_30, %c0_31], %67 {strides = array<i32>} : memref<1x16x384xbf16, #tpu.memory_space<vmem>>, vector<1x16x384xbf16>,
    return
  }
  func.func @transform_0(%arg0: i32, %arg1: i32) -> (i32, i32, i32) {
    %c0_i32 = arith.constant 0 : i32
    %c0_i32_0 = arith.constant 0 : i32
    return %arg0, %arg1, %c0_i32 : i32, i32, i32
  }
  func.func @transform_1(%arg0: i32, %arg1: i32) -> (i32, i32, i32) {
    %c0_i32 = arith.constant 0 : i32
    %c0_i32_0 = arith.constant 0 : i32
    %c0_i32_1 = arith.constant 0 : i32
    %c0_i32_2 = arith.constant 0 : i32
    return %c0_i32, %c0_i32_0, %c0_i32_1 : i32, i32, i32
  }
  func.func @transform_2(%arg0: i32, %arg1: i32) -> (i32, i32, i32) {
    %c0_i32 = arith.constant 0 : i32
    %c0_i32_0 = arith.constant 0 : i32
    %c0_i32_1 = arith.constant 0 : i32
    %c0_i32_2 = arith.constant 0 : i32
    return %c0_i32, %c0_i32_0, %c0_i32_1 : i32, i32, i32
  }
  func.func @transform_3(%arg0: i32, %arg1: i32) -> (i32, i32, i32) {
    %c0_i32 = arith.constant 0 : i32
    %c0_i32_0 = arith.constant 0 : i32
    %c0_i32_1 = arith.constant 0 : i32
    %c0_i32_2 = arith.constant 0 : i32
    return %c0_i32, %c0_i32_0, %c0_i32_1 : i32, i32, i32
  }
  func.func @transform_4(%arg0: i32, %arg1: i32) -> (i32, i32, i32) {
    %c0_i32 = arith.constant 0 : i32
    %c0_i32_0 = arith.constant 0 : i32
    %c0_i32_1 = arith.constant 0 : i32
    %c0_i32_2 = arith.constant 0 : i32
    return %c0_i32, %c0_i32_0, %c0_i32_1 : i32, i32, i32
  }
  func.func @transform_5(%arg0: i32, %arg1: i32) -> (i32, i32, i32) {
    %c0_i32 = arith.constant 0 : i32
    %c0_i32_0 = arith.constant 0 : i32
    %c0_i32_1 = arith.constant 0 : i32
    %c0_i32_2 = arith.constant 0 : i32
    return %c0_i32, %c0_i32_0, %c0_i32_1 : i32, i32, i32
  }
  func.func @transform_6(%arg0: i32, %arg1: i32) -> (i32, i32, i32) {
    %c0_i32 = arith.constant 0 : i32
    %c0_i32_0 = arith.constant 0 : i32
    %c0_i32_1 = arith.constant 0 : i32
    %c0_i32_2 = arith.constant 0 : i32
    return %c0_i32, %c0_i32_0, %c0_i32_1 : i32, i32, i32
  }
  func.func @transform_7(%arg0: i32, %arg1: i32) -> (i32, i32, i32) {
    %c0_i32 = arith.constant 0 : i32
    %c0_i32_0 = arith.constant 0 : i32
    %c0_i32_1 = arith.constant 0 : i32
    %c0_i32_2 = arith.constant 0 : i32
    return %c0_i32, %c0_i32_0, %c0_i32_1 : i32, i32, i32
  }
  func.func @transform_8(%arg0: i32, %arg1: i32) -> (i32, i32, i32) {
    %c0_i32 = arith.constant 0 : i32
    %c0_i32_0 = arith.constant 0 : i32
    %c0_i32_1 = arith.constant 0 : i32
    %c0_i32_2 = arith.constant 0 : i32
    return %c0_i32, %c0_i32_0, %c0_i32_1 : i32, i32, i32
  }
  func.func @transform_9(%arg0: i32, %arg1: i32) -> (i32, i32, i32) {
    %c0_i32 = arith.constant 0 : i32
    %c0_i32_0 = arith.constant 0 : i32
    %c0_i32_1 = arith.constant 0 : i32
    %c0_i32_2 = arith.constant 0 : i32
    return %c0_i32, %c0_i32_0, %c0_i32_1 : i32, i32, i32
  }
  func.func @transform_10(%arg0: i32, %arg1: i32) -> (i32, i32, i32) {
    %c0_i32 = arith.constant 0 : i32
    %c0_i32_0 = arith.constant 0 : i32
    %c0_i32_1 = arith.constant 0 : i32
    %c0_i32_2 = arith.constant 0 : i32
    return %c0_i32, %c0_i32_0, %c0_i32_1 : i32, i32, i32
  }
  func.func @transform_11(%arg0: i32, %arg1: i32) -> (i32, i32, i32) {
    %c0_i32 = arith.constant 0 : i32
    %c0_i32_0 = arith.constant 0 : i32
    %c0_i32_1 = arith.constant 0 : i32
    %c0_i32_2 = arith.constant 0 : i32
    return %c0_i32, %c0_i32_0, %c0_i32_1 : i32, i32, i32
  }
  func.func @transform_12(%arg0: i32, %arg1: i32) -> (i32, i32, i32) {
    %c0_i32 = arith.constant 0 : i32
    %c0_i32_0 = arith.constant 0 : i32
    return %arg0, %arg1, %c0_i32 : i32, i32, i32
  }
}

</mosaic_0001>

<llo_original>
// kernel: tpu_custom_call.1
$region0: #{tpu_custom_call.1}
  #allocation0 [shape = 'u32[]', space=smem, size = 0x4, offset = 0x4, fixed_abs, tag = 'smem constant byte address 0x4 - core index']
  #allocation1 [shape = 'u32[144,128]{1,0:T(1,128)}', space=vmem, size = 0x12000, scoped, tag = 'internal scratch']
  %s0 = inlined_call_operand.hbm [shape: bf16[4,16,360], index: 0, kind: input, shape index: {}]
  %s1 = inlined_call_operand.hbm [shape: bf16[4,360,256], index: 1, kind: input, shape index: {}]
  %s2 = inlined_call_operand.hbm [shape: f32[4,1,256], index: 2, kind: input, shape index: {}]
  %s3 = inlined_call_operand.hbm [shape: bf16[4,256,256], index: 3, kind: input, shape index: {}]
  %s4 = inlined_call_operand.hbm [shape: f32[4,1,256], index: 4, kind: input, shape index: {}]
  %s5 = inlined_call_operand.hbm [shape: bf16[4,256,256], index: 5, kind: input, shape index: {}]
  %s6 = inlined_call_operand.hbm [shape: f32[4,1,256], index: 6, kind: input, shape index: {}]
  %s7 = inlined_call_operand.hbm [shape: bf16[4,256,256], index: 7, kind: input, shape index: {}]
  %s8 = inlined_call_operand.hbm [shape: f32[4,1,256], index: 8, kind: input, shape index: {}]
  %s9 = inlined_call_operand.hbm [shape: bf16[4,256,384], index: 9, kind: input, shape index: {}]
  %s10 = inlined_call_operand.vmem [shape: f32[4,1,384], index: 10, kind: input, shape index: {}]
  %s11 = inlined_call_operand.vmem [shape: f32[4,1,384], index: 11, kind: input, shape index: {}]
  %s12 = inlined_call_operand.hbm [shape: bf16[4,16,384], index: 12, kind: output, shape index: {}]
  %s13 = sld [smem:[#allocation0]]
  $region121: #{tpu_custom_call.1} parent=0
    _
  %s15 = ssub.s32 1, %s13
  %s16 = scalar_select 0, %s15, %s13
  $region1: #{tpu_custom_call.1} parent=0
    #allocation2 [shape = 'u8[24576]{0}', space=vmem, size = 0x6000, scoped, tag = 'input window, operand 0']
    #allocation3 [shape = 's32[2]{0}', space=sflag, size = 0x8, scoped, tag = 'scoped memory for tpu_custom_call.1']
    #allocation4 [shape = 's32[2]{0}', space=sflag, size = 0x8, scoped, tag = 'scoped memory for tpu_custom_call.1']
    #allocation5 [shape = 'u8[737280]{0}', space=vmem, size = 0xb4000, scoped, tag = 'input window, operand 1, single buffered']
    #allocation6 [shape = 's32[1]{0}', space=sflag, size = 0x4, scoped, tag = 'scoped memory for tpu_custom_call.1']
    #allocation7 [shape = 'u8[4096]{0}', space=vmem, size = 0x1000, scoped, tag = 'input window, operand 2, single buffered']
    #allocation8 [shape = 'u8[524288]{0}', space=vmem, size = 0x80000, scoped, tag = 'input window, operand 3, single buffered']
    #allocation9 [shape = 's32[1]{0}', space=sflag, size = 0x4, scoped, tag = 'scoped memory for tpu_custom_call.1']
    #allocation10 [shape = 'u8[4096]{0}', space=vmem, size = 0x1000, scoped, tag = 'input window, operand 4, single buffered']
    #allocation11 [shape = 'u8[524288]{0}', space=vmem, size = 0x80000, scoped, tag = 'input window, operand 5, single buffered']
    #allocation12 [shape = 's32[1]{0}', space=sflag, size = 0x4, scoped, tag = 'scoped memory for tpu_custom_call.1']
    #allocation13 [shape = 'u8[4096]{0}', space=vmem, size = 0x1000, scoped, tag = 'input window, operand 6, single buffered']
    #allocation14 [shape = 'u8[524288]{0}', space=vmem, size = 0x80000, scoped, tag = 'input window, operand 7, single buffered']
    #allocation15 [shape = 's32[1]{0}', space=sflag, size = 0x4, scoped, tag = 'scoped memory for tpu_custom_call.1']
    #allocation16 [shape = 'u8[4096]{0}', space=vmem, size = 0x1000, scoped, tag = 'input window, operand 8, single buffered']
    #allocation17 [shape = 'u8[786432]{0}', space=vmem, size = 0xc0000, scoped, tag = 'input window, operand 9, single buffered']
    #allocation18 [shape = 's32[1]{0}', space=sflag, size = 0x4, scoped, tag = 'scoped memory for tpu_custom_call.1']
    #allocation19 [shape = 'u8[24576]{0}', space=vmem, size = 0x6000, scoped, tag = 'output window, operand 0']
    %17 = vsyncpa [#allocation3], 0
    %s18 = scalar_lea.sflag [#allocation3], 1
    %19 = vsyncpa %s18, 0
    %20 = vsyncpa [#allocation6], 0
    %21 = vsyncpa [#allocation9], 0
    %22 = vsyncpa [#allocation12], 0
    %23 = vsyncpa [#allocation15], 0
    %24 = vsyncpa [#allocation18], 0
    %25 = vsyncpa [#allocation4], 0
    %s26 = scalar_lea.sflag [#allocation4], 1
    %27 = vsyncpa %s26, 0
    loop: start=0, step=1, limit=6
    $region2: #{tpu_custom_call.1} parent=1 // loop_pre_header
      _
    $region3: #{tpu_custom_call.1} parent=1 // loop_header
      %s29 = sphi 0, %s33
      %p30 = scmp.ge.s32.totalorder %s29, 6
      %s36 = sphi 0, %s48
      %s37 = sphi 0, %s44
      %s38 = sphi 0, %s36
      %s39 = sphi 0, %s37
      %s40 = sphi 0, %s38
      %s41 = sphi 0, %s39
      %s53 = sphi 0, %s55
      %s56 = sphi 0, %s53
      %s57 = sphi 0, %s56
      %s73 = sphi 0, %s57
      %s77 = sphi 0, %s77
      %s79 = sphi 0, %s77
      %s80 = sphi 0, %s79
      %s94 = sphi 0, %s80
      %s98 = sphi 0, %s98
      %s100 = sphi 0, %s98
      %s101 = sphi 0, %s100
      %s115 = sphi 0, %s101
      %s119 = sphi 0, %s119
      %s121 = sphi 0, %s119
      %s122 = sphi 0, %s121
      %s136 = sphi 0, %s122
      %s140 = sphi 0, %s140
      %s142 = sphi 0, %s140
      %s143 = sphi 0, %s142
      %s157 = sphi 0, %s143
      %s161 = sphi 0, %s161
      %s163 = sphi 0, %s161
      %s164 = sphi 0, %s163
      %s178 = sphi 0, %s164
      %s182 = sphi 0, %s182
      %s184 = sphi 0, %s182
      %s185 = sphi 0, %s184
      %s199 = sphi 0, %s185
      %s203 = sphi 0, %s203
      %s205 = sphi 0, %s203
      %s206 = sphi 0, %s205
      %s220 = sphi 0, %s206
      %s224 = sphi 0, %s224
      %s226 = sphi 0, %s224
      %s227 = sphi 0, %s226
      %s241 = sphi 0, %s227
      %s245 = sphi 0, %s245
      %s247 = sphi 0, %s245
      %s248 = sphi 0, %s247
      %s262 = sphi 0, %s248
      %s266 = sphi 0, %s266
      %s268 = sphi 0, %s266
      %s269 = sphi 0, %s268
      %s283 = sphi 0, %s269
      %s287 = sphi 0, %s287
      %s289 = sphi 0, %s287
      %s290 = sphi 0, %s289
      %s304 = sphi 0, %s290
      %s312 = sphi 0, %s314
      %s315 = sphi 0, %s312
      %s316 = sphi 0, %s315
      %s332 = sphi 0, %s316
    $region4: #{tpu_custom_call.1} parent=1 // loop_header_branch
      %32 = sbr.rel (%p30) target = $region8
    $region5: #{tpu_custom_call.1} parent=1 // loop_body
      %s34 = ssub.s32 %s29, 1
      %s35 = ssub.s32 %s29, 2
      %s42 = sadd.s32 1, %s37
      %p43 = scmp.ge.s32.totalorder %s42, 1
      %s44 = scalar_select %p43, 0, %s42
      %s45 = sadd.s32 1, %s36
      %s46 = scalar_select %p43, %s45, %s36
      %p47 = scmp.ge.s32.totalorder %s46, 4
      %s48 = scalar_select %p47, 0, %s46
      %s49 = ssub.s32 %s36, %s48
      %s50 = ssub.s32 %s37, %s44
      %s51 = sor.u32 %s49, %s50
      %p52 = scmp.eq.s32.totalorder %s51, 0
      %s54 = sadd.s32 %s53, 1
      %s55 = scalar_select %p52, %s53, %s54
      %p58 = pneg %p52
      %p59 = scmp.eq.s32.totalorder %s29, 3
      %p60 = por %p58, %p59
      %p61 = scmp.ne.s32.totalorder %s53, %s56
      %p62 = scmp.eq.s32.totalorder %s29, 0
      %p63 = por %p61, %p62
      %p64 = scmp.ne.s32.totalorder %s53, %s56
      %p65 = scmp.eq.s32.totalorder %s34, 3
      %p66 = por %p64, %p65
      %p67 = scmp.ne.s32.totalorder %s56, %s57
      %p68 = scmp.eq.s32.totalorder %s34, 0
      %p69 = por %p67, %p68
      %p70 = scmp.ne.s32.totalorder %s56, %s57
      %p71 = scmp.eq.s32.totalorder %s35, 3
      %p72 = por %p70, %p71
      %p74 = scmp.ne.s32.totalorder %s57, %s73
      %p75 = scmp.eq.s32.totalorder %s35, 0
      %p76 = por %p74, %p75
      %s78 = sadd.s32 %s77, 1
      %p81 = scmp.eq.s32.totalorder %s29, 3
      %p82 = scmp.ne.s32.totalorder %s77, %s79
      %p83 = scmp.eq.s32.totalorder %s29, 0
      %p84 = por %p82, %p83
      %p85 = scmp.ne.s32.totalorder %s77, %s79
      %p86 = scmp.eq.s32.totalorder %s34, 3
      %p87 = por %p85, %p86
      %p88 = scmp.ne.s32.totalorder %s79, %s80
      %p89 = scmp.eq.s32.totalorder %s34, 0
      %p90 = por %p88, %p89
      %p91 = scmp.ne.s32.totalorder %s79, %s80
      %p92 = scmp.eq.s32.totalorder %s35, 3
      %p93 = por %p91, %p92
      %p95 = scmp.ne.s32.totalorder %s80, %s94
      %p96 = scmp.eq.s32.totalorder %s35, 0
      %p97 = por %p95, %p96
      %s99 = sadd.s32 %s98, 1
      %p102 = scmp.eq.s32.totalorder %s29, 3
      %p103 = scmp.ne.s32.totalorder %s98, %s100
      %p104 = scmp.eq.s32.totalorder %s29, 0
      %p105 = por %p103, %p104
      %p106 = scmp.ne.s32.totalorder %s98, %s100
      %p107 = scmp.eq.s32.totalorder %s34, 3
      %p108 = por %p106, %p107
      %p109 = scmp.ne.s32.totalorder %s100, %s101
      %p110 = scmp.eq.s32.totalorder %s34, 0
      %p111 = por %p109, %p110
      %p112 = scmp.ne.s32.totalorder %s100, %s101
      %p113 = scmp.eq.s32.totalorder %s35, 3
      %p114 = por %p112, %p113
      %p116 = scmp.ne.s32.totalorder %s101, %s115
      %p117 = scmp.eq.s32.totalorder %s35, 0
      %p118 = por %p116, %p117
      %s120 = sadd.s32 %s119, 1
      %p123 = scmp.eq.s32.totalorder %s29, 3
      %p124 = scmp.ne.s32.totalorder %s119, %s121
      %p125 = scmp.eq.s32.totalorder %s29, 0
      %p126 = por %p124, %p125
      %p127 = scmp.ne.s32.totalorder %s119, %s121
      %p128 = scmp.eq.s32.totalorder %s34, 3
      %p129 = por %p127, %p128
      %p130 = scmp.ne.s32.totalorder %s121, %s122
      %p131 = scmp.eq.s32.totalorder %s34, 0
      %p132 = por %p130, %p131
      %p133 = scmp.ne.s32.totalorder %s121, %s122
      %p134 = scmp.eq.s32.totalorder %s35, 3
      %p135 = por %p133, %p134
      %p137 = scmp.ne.s32.totalorder %s122, %s136
      %p138 = scmp.eq.s32.totalorder %s35, 0
      %p139 = por %p137, %p138
      %s141 = sadd.s32 %s140, 1
      %p144 = scmp.eq.s32.totalorder %s29, 3
      %p145 = scmp.ne.s32.totalorder %s140, %s142
      %p146 = scmp.eq.s32.totalorder %s29, 0
      %p147 = por %p145, %p146
      %p148 = scmp.ne.s32.totalorder %s140, %s142
      %p149 = scmp.eq.s32.totalorder %s34, 3
      %p150 = por %p148, %p149
      %p151 = scmp.ne.s32.totalorder %s142, %s143
      %p152 = scmp.eq.s32.totalorder %s34, 0
      %p153 = por %p151, %p152
      %p154 = scmp.ne.s32.totalorder %s142, %s143
      %p155 = scmp.eq.s32.totalorder %s35, 3
      %p156 = por %p154, %p155
      %p158 = scmp.ne.s32.totalorder %s143, %s157
      %p159 = scmp.eq.s32.totalorder %s35, 0
      %p160 = por %p158, %p159
      %s162 = sadd.s32 %s161, 1
      %p165 = scmp.eq.s32.totalorder %s29, 3
      %p166 = scmp.ne.s32.totalorder %s161, %s163
      %p167 = scmp.eq.s32.totalorder %s29, 0
      %p168 = por %p166, %p167
      %p169 = scmp.ne.s32.totalorder %s161, %s163
      %p170 = scmp.eq.s32.totalorder %s34, 3
      %p171 = por %p169, %p170
      %p172 = scmp.ne.s32.totalorder %s163, %s164
      %p173 = scmp.eq.s32.totalorder %s34, 0
      %p174 = por %p172, %p173
      %p175 = scmp.ne.s32.totalorder %s163, %s164
      %p176 = scmp.eq.s32.totalorder %s35, 3
      %p177 = por %p175, %p176
      %p179 = scmp.ne.s32.totalorder %s164, %s178
      %p180 = scmp.eq.s32.totalorder %s35, 0
      %p181 = por %p179, %p180
      %s183 = sadd.s32 %s182, 1
      %p186 = scmp.eq.s32.totalorder %s29, 3
      %p187 = scmp.ne.s32.totalorder %s182, %s184
      %p188 = scmp.eq.s32.totalorder %s29, 0
      %p189 = por %p187, %p188
      %p190 = scmp.ne.s32.totalorder %s182, %s184
      %p191 = scmp.eq.s32.totalorder %s34, 3
      %p192 = por %p190, %p191
      %p193 = scmp.ne.s32.totalorder %s184, %s185
      %p194 = scmp.eq.s32.totalorder %s34, 0
      %p195 = por %p193, %p194
      %p196 = scmp.ne.s32.totalorder %s184, %s185
      %p197 = scmp.eq.s32.totalorder %s35, 3
      %p198 = por %p196, %p197
      %p200 = scmp.ne.s32.totalorder %s185, %s199
      %p201 = scmp.eq.s32.totalorder %s35, 0
      %p202 = por %p200, %p201
      %s204 = sadd.s32 %s203, 1
      %p207 = scmp.eq.s32.totalorder %s29, 3
      %p208 = scmp.ne.s32.totalorder %s203, %s205
      %p209 = scmp.eq.s32.totalorder %s29, 0
      %p210 = por %p208, %p209
      %p211 = scmp.ne.s32.totalorder %s203, %s205
      %p212 = scmp.eq.s32.totalorder %s34, 3
      %p213 = por %p211, %p212
      %p214 = scmp.ne.s32.totalorder %s205, %s206
      %p215 = scmp.eq.s32.totalorder %s34, 0
      %p216 = por %p214, %p215
      %p217 = scmp.ne.s32.totalorder %s205, %s206
      %p218 = scmp.eq.s32.totalorder %s35, 3
      %p219 = por %p217, %p218
      %p221 = scmp.ne.s32.totalorder %s206, %s220
      %p222 = scmp.eq.s32.totalorder %s35, 0
      %p223 = por %p221, %p222
      %s225 = sadd.s32 %s224, 1
      %p228 = scmp.eq.s32.totalorder %s29, 3
      %p229 = scmp.ne.s32.totalorder %s224, %s226
      %p230 = scmp.eq.s32.totalorder %s29, 0
      %p231 = por %p229, %p230
      %p232 = scmp.ne.s32.totalorder %s224, %s226
      %p233 = scmp.eq.s32.totalorder %s34, 3
      %p234 = por %p232, %p233
      %p235 = scmp.ne.s32.totalorder %s226, %s227
      %p236 = scmp.eq.s32.totalorder %s34, 0
      %p237 = por %p235, %p236
      %p238 = scmp.ne.s32.totalorder %s226, %s227
      %p239 = scmp.eq.s32.totalorder %s35, 3
      %p240 = por %p238, %p239
      %p242 = scmp.ne.s32.totalorder %s227, %s241
      %p243 = scmp.eq.s32.totalorder %s35, 0
      %p244 = por %p242, %p243
      %s246 = sadd.s32 %s245, 1
      %p249 = scmp.eq.s32.totalorder %s29, 3
      %p250 = scmp.ne.s32.totalorder %s245, %s247
      %p251 = scmp.eq.s32.totalorder %s29, 0
      %p252 = por %p250, %p251
      %p253 = scmp.ne.s32.totalorder %s245, %s247
      %p254 = scmp.eq.s32.totalorder %s34, 3
      %p255 = por %p253, %p254
      %p256 = scmp.ne.s32.totalorder %s247, %s248
      %p257 = scmp.eq.s32.totalorder %s34, 0
      %p258 = por %p256, %p257
      %p259 = scmp.ne.s32.totalorder %s247, %s248
      %p260 = scmp.eq.s32.totalorder %s35, 3
      %p261 = por %p259, %p260
      %p263 = scmp.ne.s32.totalorder %s248, %s262
      %p264 = scmp.eq.s32.totalorder %s35, 0
      %p265 = por %p263, %p264
      %s267 = sadd.s32 %s266, 1
      %p270 = scmp.eq.s32.totalorder %s29, 3
      %p271 = scmp.ne.s32.totalorder %s266, %s268
      %p272 = scmp.eq.s32.totalorder %s29, 0
      %p273 = por %p271, %p272
      %p274 = scmp.ne.s32.totalorder %s266, %s268
      %p275 = scmp.eq.s32.totalorder %s34, 3
      %p276 = por %p274, %p275
      %p277 = scmp.ne.s32.totalorder %s268, %s269
      %p278 = scmp.eq.s32.totalorder %s34, 0
      %p279 = por %p277, %p278
      %p280 = scmp.ne.s32.totalorder %s268, %s269
      %p281 = scmp.eq.s32.totalorder %s35, 3
      %p282 = por %p280, %p281
      %p284 = scmp.ne.s32.totalorder %s269, %s283
      %p285 = scmp.eq.s32.totalorder %s35, 0
      %p286 = por %p284, %p285
      %s288 = sadd.s32 %s287, 1
      %p291 = scmp.eq.s32.totalorder %s29, 3
      %p292 = scmp.ne.s32.totalorder %s287, %s289
      %p293 = scmp.eq.s32.totalorder %s29, 0
      %p294 = por %p292, %p293
      %p295 = scmp.ne.s32.totalorder %s287, %s289
      %p296 = scmp.eq.s32.totalorder %s34, 3
      %p297 = por %p295, %p296
      %p298 = scmp.ne.s32.totalorder %s289, %s290
      %p299 = scmp.eq.s32.totalorder %s34, 0
      %p300 = por %p298, %p299
      %p301 = scmp.ne.s32.totalorder %s289, %s290
      %p302 = scmp.eq.s32.totalorder %s35, 3
      %p303 = por %p301, %p302
      %p305 = scmp.ne.s32.totalorder %s290, %s304
      %p306 = scmp.eq.s32.totalorder %s35, 0
      %p307 = por %p305, %p306
      %s308 = ssub.s32 %s36, %s48
      %s309 = ssub.s32 %s37, %s44
      %s310 = sor.u32 %s308, %s309
      %p311 = scmp.eq.s32.totalorder %s310, 0
      %s313 = sadd.s32 %s312, 1
      %s314 = scalar_select %p311, %s312, %s313
      %p317 = pneg %p311
      %p318 = scmp.eq.s32.totalorder %s29, 3
      %p319 = por %p317, %p318
      %p320 = scmp.ne.s32.totalorder %s312, %s315
      %p321 = scmp.eq.s32.totalorder %s29, 0
      %p322 = por %p320, %p321
      %p323 = scmp.ne.s32.totalorder %s312, %s315
      %p324 = scmp.eq.s32.totalorder %s34, 3
      %p325 = por %p323, %p324
      %p326 = scmp.ne.s32.totalorder %s315, %s316
      %p327 = scmp.eq.s32.totalorder %s34, 0
      %p328 = por %p326, %p327
      %p329 = scmp.ne.s32.totalorder %s315, %s316
      %p330 = scmp.eq.s32.totalorder %s35, 3
      %p331 = por %p329, %p330
      %p333 = scmp.ne.s32.totalorder %s316, %s332
      %p334 = scmp.eq.s32.totalorder %s35, 0
      %p335 = por %p333, %p334
      %p336 = scmp.le.s32.totalorder 1, %s29
      %p337 = scmp.lt.s32.totalorder %s29, 5
      %p338 = pnand %p336, %p337
      %p339 = pneg %p338
      // Predicated region
      $region9: #{tpu_custom_call.1} parent=5 // pred_check
        _
      $region10: #{tpu_custom_call.1} parent=5 // pred_check_branch
        %341 = sbr.rel (%p338) target = $region12
      $region11: #{tpu_custom_call.1} parent=5 // pred_region
        %s342 = ssub.s32 %s29, 1
        // Predicated region
        $region13: #{tpu_custom_call.1} parent=11 // pred_check
          %p343 = pneg %p90
        $region14: #{tpu_custom_call.1} parent=11 // pred_check_branch
          %345 = sbr.rel (%p343) target = $region16
        $region15: #{tpu_custom_call.1} parent=11 // pred_region
          %s347 = ssub.s32 23040, 23040
          %348 = vsyncadd [#allocation6], %s347
          %s349 = sshll.u32 [#allocation5], 4
          %s350 = int_to_ptr.vmem [resolvable:$true] %s349
          %355 = dma.hbm_to_vmem [thread:$0]  %s1, 23040, %s350, [#allocation6], 128, 128, 8
        $region16: #{tpu_custom_call.1} parent=11 // pred_fallthru
          _
        // Predicated region
        $region17: #{tpu_custom_call.1} parent=11 // pred_check
          %p356 = pneg %p111
        $region18: #{tpu_custom_call.1} parent=11 // pred_check_branch
          %358 = sbr.rel (%p356) target = $region20
        $region19: #{tpu_custom_call.1} parent=11 // pred_region
          %s360 = ssub.s32 128, 128
          %361 = vsyncadd [#allocation6], %s360
          %s362 = sshll.u32 [#allocation7], 4
          %s363 = int_to_ptr.vmem [resolvable:$true] %s362
          %368 = dma.hbm_to_vmem [thread:$0]  %s2, 128, %s363, [#allocation6], 32, 32, 2
        $region20: #{tpu_custom_call.1} parent=11 // pred_fallthru
          _
        // Predicated region
        $region21: #{tpu_custom_call.1} parent=11 // pred_check
          %p369 = pneg %p132
        $region22: #{tpu_custom_call.1} parent=11 // pred_check_branch
          %371 = sbr.rel (%p369) target = $region24
        $region23: #{tpu_custom_call.1} parent=11 // pred_region
          %s373 = ssub.s32 16384, 16384
          %374 = vsyncadd [#allocation9], %s373
          %s375 = sshll.u32 [#allocation8], 4
          %s376 = int_to_ptr.vmem [resolvable:$true] %s375
          %381 = dma.hbm_to_vmem [thread:$0]  %s3, 16384, %s376, [#allocation9], 128, 128, 8
        $region24: #{tpu_custom_call.1} parent=11 // pred_fallthru
          _
        // Predicated region
        $region25: #{tpu_custom_call.1} parent=11 // pred_check
          %p382 = pneg %p153
        $region26: #{tpu_custom_call.1} parent=11 // pred_check_branch
          %384 = sbr.rel (%p382) target = $region28
        $region27: #{tpu_custom_call.1} parent=11 // pred_region
          %s386 = ssub.s32 128, 128
          %387 = vsyncadd [#allocation9], %s386
          %s388 = sshll.u32 [#allocation10], 4
          %s389 = int_to_ptr.vmem [resolvable:$true] %s388
          %394 = dma.hbm_to_vmem [thread:$0]  %s4, 128, %s389, [#allocation9], 32, 32, 2
        $region28: #{tpu_custom_call.1} parent=11 // pred_fallthru
          _
        // Predicated region
        $region29: #{tpu_custom_call.1} parent=11 // pred_check
          %p395 = pneg %p174
        $region30: #{tpu_custom_call.1} parent=11 // pred_check_branch
          %397 = sbr.rel (%p395) target = $region32
        $region31: #{tpu_custom_call.1} parent=11 // pred_region
          %s399 = ssub.s32 16384, 16384
          %400 = vsyncadd [#allocation12], %s399
          %s401 = sshll.u32 [#allocation11], 4
          %s402 = int_to_ptr.vmem [resolvable:$true] %s401
          %407 = dma.hbm_to_vmem [thread:$0]  %s5, 16384, %s402, [#allocation12], 128, 128, 8
        $region32: #{tpu_custom_call.1} parent=11 // pred_fallthru
          _
        // Predicated region
        $region33: #{tpu_custom_call.1} parent=11 // pred_check
          %p408 = pneg %p195
        $region34: #{tpu_custom_call.1} parent=11 // pred_check_branch
          %410 = sbr.rel (%p408) target = $region36
        $region35: #{tpu_custom_call.1} parent=11 // pred_region
          %s412 = ssub.s32 128, 128
          %413 = vsyncadd [#allocation12], %s412
          %s414 = sshll.u32 [#allocation13], 4
          %s415 = int_to_ptr.vmem [resolvable:$true] %s414
          %420 = dma.hbm_to_vmem [thread:$0]  %s6, 128, %s415, [#allocation12], 32, 32, 2
        $region36: #{tpu_custom_call.1} parent=11 // pred_fallthru
          _
        // Predicated region
        $region37: #{tpu_custom_call.1} parent=11 // pred_check
          %p421 = pneg %p216
        $region38: #{tpu_custom_call.1} parent=11 // pred_check_branch
          %423 = sbr.rel (%p421) target = $region40
        $region39: #{tpu_custom_call.1} parent=11 // pred_region
          %s425 = ssub.s32 16384, 16384
          %426 = vsyncadd [#allocation15], %s425
          %s427 = sshll.u32 [#allocation14], 4
          %s428 = int_to_ptr.vmem [resolvable:$true] %s427
          %433 = dma.hbm_to_vmem [thread:$0]  %s7, 16384, %s428, [#allocation15], 128, 128, 8
        $region40: #{tpu_custom_call.1} parent=11 // pred_fallthru
          _
        // Predicated region
        $region41: #{tpu_custom_call.1} parent=11 // pred_check
          %p434 = pneg %p237
        $region42: #{tpu_custom_call.1} parent=11 // pred_check_branch
          %436 = sbr.rel (%p434) target = $region44
        $region43: #{tpu_custom_call.1} parent=11 // pred_region
          %s438 = ssub.s32 128, 128
          %439 = vsyncadd [#allocation15], %s438
          %s440 = sshll.u32 [#allocation16], 4
          %s441 = int_to_ptr.vmem [resolvable:$true] %s440
          %446 = dma.hbm_to_vmem [thread:$0]  %s8, 128, %s441, [#allocation15], 32, 32, 2
        $region44: #{tpu_custom_call.1} parent=11 // pred_fallthru
          _
        // Predicated region
        $region45: #{tpu_custom_call.1} parent=11 // pred_check
          %p447 = pneg %p258
        $region46: #{tpu_custom_call.1} parent=11 // pred_check_branch
          %449 = sbr.rel (%p447) target = $region48
        $region47: #{tpu_custom_call.1} parent=11 // pred_region
          %s451 = ssub.s32 24576, 24576
          %452 = vsyncadd [#allocation18], %s451
          %s453 = sshll.u32 [#allocation17], 4
          %s454 = int_to_ptr.vmem [resolvable:$true] %s453
          %459 = dma.hbm_to_vmem [thread:$0]  %s9, 24576, %s454, [#allocation18], 192, 192, 12
        $region48: #{tpu_custom_call.1} parent=11 // pred_fallthru
          _
        // Predicated region
        $region49: #{tpu_custom_call.1} parent=11 // pred_check
          %p460 = pneg %p279
        $region50: #{tpu_custom_call.1} parent=11 // pred_check_branch
          %462 = sbr.rel (%p460) target = $region52
        $region51: #{tpu_custom_call.1} parent=11 // pred_region
          _
        $region52: #{tpu_custom_call.1} parent=11 // pred_fallthru
          _
        // Predicated region
        $region53: #{tpu_custom_call.1} parent=11 // pred_check
          %p463 = pneg %p300
        $region54: #{tpu_custom_call.1} parent=11 // pred_check_branch
          %465 = sbr.rel (%p463) target = $region56
        $region55: #{tpu_custom_call.1} parent=11 // pred_region
          _
        $region56: #{tpu_custom_call.1} parent=11 // pred_fallthru
          _
      $region12: #{tpu_custom_call.1} parent=5 // pred_fallthru
        _
      %p466 = scmp.lt.s32.totalorder %s29, 4
      // Predicated region
      $region57: #{tpu_custom_call.1} parent=5 // pred_check
        %p467 = pneg %p466
      $region58: #{tpu_custom_call.1} parent=5 // pred_check_branch
        %469 = sbr.rel (%p467) target = $region60
      $region59: #{tpu_custom_call.1} parent=5 // pred_region
        // Predicated region
        $region61: #{tpu_custom_call.1} parent=59 // pred_check
          %p470 = pneg %p63
        $region62: #{tpu_custom_call.1} parent=59 // pred_check_branch
          %472 = sbr.rel (%p470) target = $region64
        $region63: #{tpu_custom_call.1} parent=59 // pred_region
          %s473 = sand.u32 %s53, 1
          %s474 = scalar_lea.sflag [#allocation3], %s473
          %s475 = sand.u32 %s53, 1
          %s476 = smul.addr %s475, 24
          %s477 = scalar_lea.vmem [#allocation2], %s476
          %s478 = smul.u32 2, %s37
          %s480 = ssub.s32 384, 384
          %481 = vsyncadd %s474, %s480
          %s482 = smul.addr %s478, 3
          %s483 = smul.addr %s36, 6
          %s484 = sadd.s32 %s482, %s483
          %s485 = smul.addr %s484, 64
          %s486 = scalar_lea.hbm %s0, %s485
          %s487 = sshll.u32 %s477, 4
          %s488 = int_to_ptr.vmem [resolvable:$true] %s487
          %493 = dma.hbm_to_vmem [thread:$0]  %s486, 384, %s488, %s474, 192, 192, 12
        $region64: #{tpu_custom_call.1} parent=59 // pred_fallthru
          _
      $region60: #{tpu_custom_call.1} parent=5 // pred_fallthru
        _
      %p494 = scmp.le.s32.totalorder 1, %s29
      %p495 = scmp.lt.s32.totalorder %s29, 5
      %p496 = pnand %p494, %p495
      %p497 = pneg %p496
      // Predicated region
      $region65: #{tpu_custom_call.1} parent=5 // pred_check
        _
      $region66: #{tpu_custom_call.1} parent=5 // pred_check_branch
        %499 = sbr.rel (%p496) target = $region68
      $region67: #{tpu_custom_call.1} parent=5 // pred_region
        %s500 = ssub.s32 %s29, 1
        %s501 = sand.u32 %s56, 1
        %s502 = scalar_lea.sflag [#allocation3], %s501
        %s503 = sand.u32 %s56, 1
        %s504 = smul.addr %s503, 24
        %s505 = scalar_lea.vmem [#allocation2], %s504
        // Predicated region
        $region69: #{tpu_custom_call.1} parent=67 // pred_check
          %p506 = pneg %p69
        $region70: #{tpu_custom_call.1} parent=67 // pred_check_branch
          %508 = sbr.rel (%p506) target = $region72
        $region71: #{tpu_custom_call.1} parent=67 // pred_region
          %509 = dma.done %s502, 384
        $region72: #{tpu_custom_call.1} parent=67 // pred_fallthru
          _
        // Predicated region
        $region73: #{tpu_custom_call.1} parent=67 // pred_check
          %p510 = pneg %p90
        $region74: #{tpu_custom_call.1} parent=67 // pred_check_branch
          %512 = sbr.rel (%p510) target = $region76
        $region75: #{tpu_custom_call.1} parent=67 // pred_region
          %513 = dma.done [#allocation6], 23040
        $region76: #{tpu_custom_call.1} parent=67 // pred_fallthru
          _
        // Predicated region
        $region77: #{tpu_custom_call.1} parent=67 // pred_check
          %p514 = pneg %p111
        $region78: #{tpu_custom_call.1} parent=67 // pred_check_branch
          %516 = sbr.rel (%p514) target = $region80
        $region79: #{tpu_custom_call.1} parent=67 // pred_region
          %517 = dma.done [#allocation6], 128
        $region80: #{tpu_custom_call.1} parent=67 // pred_fallthru
          _
        // Predicated region
        $region81: #{tpu_custom_call.1} parent=67 // pred_check
          %p518 = pneg %p132
        $region82: #{tpu_custom_call.1} parent=67 // pred_check_branch
          %520 = sbr.rel (%p518) target = $region84
        $region83: #{tpu_custom_call.1} parent=67 // pred_region
          %521 = dma.done [#allocation9], 16384
        $region84: #{tpu_custom_call.1} parent=67 // pred_fallthru
          _
        // Predicated region
        $region85: #{tpu_custom_call.1} parent=67 // pred_check
          %p522 = pneg %p153
        $region86: #{tpu_custom_call.1} parent=67 // pred_check_branch
          %524 = sbr.rel (%p522) target = $region88
        $region87: #{tpu_custom_call.1} parent=67 // pred_region
          %525 = dma.done [#allocation9], 128
        $region88: #{tpu_custom_call.1} parent=67 // pred_fallthru
          _
        // Predicated region
        $region89: #{tpu_custom_call.1} parent=67 // pred_check
          %p526 = pneg %p174
        $region90: #{tpu_custom_call.1} parent=67 // pred_check_branch
          %528 = sbr.rel (%p526) target = $region92
        $region91: #{tpu_custom_call.1} parent=67 // pred_region
          %529 = dma.done [#allocation12], 16384
        $region92: #{tpu_custom_call.1} parent=67 // pred_fallthru
          _
        // Predicated region
        $region93: #{tpu_custom_call.1} parent=67 // pred_check
          %p530 = pneg %p195
        $region94: #{tpu_custom_call.1} parent=67 // pred_check_branch
          %532 = sbr.rel (%p530) target = $region96
        $region95: #{tpu_custom_call.1} parent=67 // pred_region
          %533 = dma.done [#allocation12], 128
        $region96: #{tpu_custom_call.1} parent=67 // pred_fallthru
          _
        // Predicated region
        $region97: #{tpu_custom_call.1} parent=67 // pred_check
          %p534 = pneg %p216
        $region98: #{tpu_custom_call.1} parent=67 // pred_check_branch
          %536 = sbr.rel (%p534) target = $region100
        $region99: #{tpu_custom_call.1} parent=67 // pred_region
          %537 = dma.done [#allocation15], 16384
        $region100: #{tpu_custom_call.1} parent=67 // pred_fallthru
          _
        // Predicated region
        $region101: #{tpu_custom_call.1} parent=67 // pred_check
          %p538 = pneg %p237
        $region102: #{tpu_custom_call.1} parent=67 // pred_check_branch
          %540 = sbr.rel (%p538) target = $region104
        $region103: #{tpu_custom_call.1} parent=67 // pred_region
          %541 = dma.done [#allocation15], 128
        $region104: #{tpu_custom_call.1} parent=67 // pred_fallthru
          _
        // Predicated region
        $region105: #{tpu_custom_call.1} parent=67 // pred_check
          %p542 = pneg %p258
        $region106: #{tpu_custom_call.1} parent=67 // pred_check_branch
          %544 = sbr.rel (%p542) target = $region108
        $region107: #{tpu_custom_call.1} parent=67 // pred_region
          %545 = dma.done [#allocation18], 24576
        $region108: #{tpu_custom_call.1} parent=67 // pred_fallthru
          _
        %s546 = sand.u32 %s56, 1
        %s547 = scalar_lea.sflag [#allocation3], %s546
        %s548 = sand.u32 %s56, 1
        %s549 = smul.addr %s548, 24
        %s550 = scalar_lea.vmem [#allocation2], %s549
        %p551 = pneg %p69
        %p552 = pneg %p66
        %p553 = pneg %p90
        %p554 = pneg %p87
        %p555 = pneg %p111
        %p556 = pneg %p108
        %p557 = pneg %p132
        %p558 = pneg %p129
        %p559 = pneg %p153
        %p560 = pneg %p150
        %p561 = pneg %p174
        %p562 = pneg %p171
        %p563 = pneg %p195
        %p564 = pneg %p192
        %p565 = pneg %p216
        %p566 = pneg %p213
        %p567 = pneg %p237
        %p568 = pneg %p234
        %p569 = pneg %p258
        %p570 = pneg %p255
        %p571 = pneg %p279
        %p572 = pneg %p276
        %p573 = pneg %p300
        %p574 = pneg %p297
        %p575 = pneg %p328
        %p576 = pneg %p325
        %s577 = sand.u32 %s315, 1
        %s578 = scalar_lea.sflag [#allocation4], %s577
        %s579 = sand.u32 %s315, 1
        %s580 = smul.addr %s579, 24
        %s581 = scalar_lea.vmem [#allocation19], %s580
        %s582 = smul.u32 2, %s39
        %s583 = smul.u32 2, %s39
        %v585 = vld [vmem:[%s505] sm:$0xff]
        %v586 = vld [vmem:[%s505 + $0x8] sm:$0xf]
        %v587 = vld [vmem:[%s505 + $0xc] sm:$0xff]
        %v588 = vld [vmem:[%s505 + $0x14] sm:$0xf]
        %s589 = smul.u32 %s38, 90
        %s590 = smul.addr %s589, 4
        %s591 = scalar_lea.vmem [#allocation5], %s590
        %v592 = vld [vmem:[%s591] sm:$0xff]
        %v593 = vld [vmem:[%s591 + $0x8] sm:$0xff]
        %v594 = vld [vmem:[%s591 + $0x10] sm:$0xff]
        %v595 = vld [vmem:[%s591 + $0x18] sm:$0xff]
        %v596 = vld [vmem:[%s591 + $0x20] sm:$0xff]
        %v597 = vld [vmem:[%s591 + $0x28] sm:$0xff]
        %v598 = vld [vmem:[%s591 + $0x30] sm:$0xff]
        %v599 = vld [vmem:[%s591 + $0x38] sm:$0xff]
        %v600 = vld [vmem:[%s591 + $0x40] sm:$0xff]
        %v601 = vld [vmem:[%s591 + $0x48] sm:$0xff]
        %v602 = vld [vmem:[%s591 + $0x50] sm:$0xff]
        %v603 = vld [vmem:[%s591 + $0x58] sm:$0xff]
        %v604 = vld [vmem:[%s591 + $0x60] sm:$0xff]
        %v605 = vld [vmem:[%s591 + $0x68] sm:$0xff]
        %v606 = vld [vmem:[%s591 + $0x70] sm:$0xff]
        %v607 = vld [vmem:[%s591 + $0x78] sm:$0xff]
        %v608 = vld [vmem:[%s591 + $0x80] sm:$0xff]
        %v609 = vld [vmem:[%s591 + $0x88] sm:$0xff]
        %v610 = vld [vmem:[%s591 + $0x90] sm:$0xff]
        %v611 = vld [vmem:[%s591 + $0x98] sm:$0xff]
        %v612 = vld [vmem:[%s591 + $0xa0] sm:$0xff]
        %v613 = vld [vmem:[%s591 + $0xa8] sm:$0xff]
        %v614 = vld [vmem:[%s591 + $0xb0] sm:$0xff]
        %v615 = vld [vmem:[%s591 + $0xb8] sm:$0xff]
        %v616 = vld [vmem:[%s591 + $0xc0] sm:$0xff]
        %v617 = vld [vmem:[%s591 + $0xc8] sm:$0xff]
        %v618 = vld [vmem:[%s591 + $0xd0] sm:$0xff]
        %v619 = vld [vmem:[%s591 + $0xd8] sm:$0xff]
        %v620 = vld [vmem:[%s591 + $0xe0] sm:$0xff]
        %v621 = vld [vmem:[%s591 + $0xe8] sm:$0xff]
        %v622 = vld [vmem:[%s591 + $0xf0] sm:$0xff]
        %v623 = vld [vmem:[%s591 + $0xf8] sm:$0xff]
        %v624 = vld [vmem:[%s591 + $0x100] sm:$0xff]
        %v625 = vld [vmem:[%s591 + $0x108] sm:$0xff]
        %v626 = vld [vmem:[%s591 + $0x110] sm:$0xff]
        %v627 = vld [vmem:[%s591 + $0x118] sm:$0xff]
        %v628 = vld [vmem:[%s591 + $0x120] sm:$0xff]
        %v629 = vld [vmem:[%s591 + $0x128] sm:$0xff]
        %v630 = vld [vmem:[%s591 + $0x130] sm:$0xff]
        %v631 = vld [vmem:[%s591 + $0x138] sm:$0xff]
        %v632 = vld [vmem:[%s591 + $0x140] sm:$0xff]
        %v633 = vld [vmem:[%s591 + $0x148] sm:$0xff]
        %v634 = vld [vmem:[%s591 + $0x150] sm:$0xff]
        %v635 = vld [vmem:[%s591 + $0x158] sm:$0xff]
        %v636 = vld [vmem:[%s591 + $0x160] sm:$0xff]
        %s637 = smul.u32 %s38, 2
        %s638 = scalar_lea.vmem [#allocation7], %s637
        %v639 = vld [vmem:[%s638] sm:$0x3]
        %v641 = vlaneseq
        %v642 = vshrl.u32 %v641, 7
        %v643 = vsub.s32 0, %v642
        %v644 = vrot.slane %v639, %v643
        %v645 = vlaneseq
        %v646 = vshrl.u32 %v645, 7
        %v647 = vsub.s32 1, %v646
        %v648 = vrot.slane %v639, %v647
        %v655 = vunpack.c.l.b16 %v585
        %v656 = vunpack.c.h.b16 %v585
        %v657 = vunpack.c.l.b16 %v586
        %v658 = vunpack.c.l.b16 %v587
        %v659 = vunpack.c.h.b16 %v587
        %v660 = vunpack.c.l.b16 %v588
        %v661 = vpack.c.b16 %v658, %v655
        %v662 = vpack.c.b16 %v659, %v656
        %v663 = vpack.c.b16 %v660, %v657
        %v711 = vunpack.c.l.b16 %v592
        %v712 = vunpack.c.h.b16 %v592
        %v713 = vunpack.c.l.b16 %v593
        %v714 = vunpack.c.h.b16 %v593
        %v715 = vunpack.c.l.b16 %v594
        %v716 = vunpack.c.h.b16 %v594
        %v717 = vunpack.c.l.b16 %v595
        %v718 = vunpack.c.h.b16 %v595
        %v719 = vunpack.c.l.b16 %v596
        %v720 = vunpack.c.h.b16 %v596
        %v721 = vunpack.c.l.b16 %v597
        %v722 = vunpack.c.h.b16 %v597
        %v723 = vunpack.c.l.b16 %v598
        %v724 = vunpack.c.h.b16 %v598
        %v725 = vunpack.c.l.b16 %v599
        %v726 = vunpack.c.h.b16 %v599
        %v727 = vunpack.c.l.b16 %v600
        %v728 = vunpack.c.h.b16 %v600
        %v729 = vunpack.c.l.b16 %v601
        %v730 = vunpack.c.h.b16 %v601
        %v731 = vunpack.c.l.b16 %v602
        %v732 = vunpack.c.h.b16 %v602
        %v733 = vunpack.c.l.b16 %v603
        %v734 = vunpack.c.h.b16 %v603
        %v735 = vunpack.c.l.b16 %v604
        %v736 = vunpack.c.h.b16 %v604
        %v737 = vunpack.c.l.b16 %v605
        %v738 = vunpack.c.h.b16 %v605
        %v739 = vunpack.c.l.b16 %v606
        %v740 = vunpack.c.h.b16 %v606
        %v741 = vunpack.c.l.b16 %v607
        %v742 = vunpack.c.h.b16 %v607
        %v743 = vunpack.c.l.b16 %v608
        %v744 = vunpack.c.h.b16 %v608
        %v745 = vunpack.c.l.b16 %v609
        %v746 = vunpack.c.h.b16 %v609
        %v747 = vunpack.c.l.b16 %v610
        %v748 = vunpack.c.h.b16 %v610
        %v749 = vunpack.c.l.b16 %v611
        %v750 = vunpack.c.h.b16 %v611
        %v751 = vunpack.c.l.b16 %v612
        %v752 = vunpack.c.h.b16 %v612
        %v753 = vunpack.c.l.b16 %v613
        %v754 = vunpack.c.h.b16 %v613
        %v755 = vunpack.c.l.b16 %v614
        %v756 = vunpack.c.h.b16 %v614
        %v757 = vunpack.c.l.b16 %v615
        %v758 = vunpack.c.h.b16 %v615
        %v759 = vunpack.c.l.b16 %v616
        %v760 = vunpack.c.h.b16 %v616
        %v761 = vunpack.c.l.b16 %v617
        %v762 = vunpack.c.h.b16 %v617
        %v763 = vunpack.c.l.b16 %v618
        %v764 = vunpack.c.h.b16 %v618
        %v765 = vunpack.c.l.b16 %v619
        %v766 = vunpack.c.h.b16 %v619
        %v767 = vunpack.c.l.b16 %v620
        %v768 = vunpack.c.h.b16 %v620
        %v769 = vunpack.c.l.b16 %v621
        %v770 = vunpack.c.h.b16 %v621
        %v771 = vunpack.c.l.b16 %v622
        %v772 = vunpack.c.h.b16 %v622
        %v773 = vunpack.c.l.b16 %v623
        %v774 = vunpack.c.h.b16 %v623
        %v775 = vunpack.c.l.b16 %v624
        %v776 = vunpack.c.h.b16 %v624
        %v777 = vunpack.c.l.b16 %v625
        %v778 = vunpack.c.h.b16 %v625
        %v779 = vunpack.c.l.b16 %v626
        %v780 = vunpack.c.h.b16 %v626
        %v781 = vunpack.c.l.b16 %v627
        %v782 = vunpack.c.h.b16 %v627
        %v783 = vunpack.c.l.b16 %v628
        %v784 = vunpack.c.h.b16 %v628
        %v785 = vunpack.c.l.b16 %v629
        %v786 = vunpack.c.h.b16 %v629
        %v787 = vunpack.c.l.b16 %v630
        %v788 = vunpack.c.h.b16 %v630
        %v789 = vunpack.c.l.b16 %v631
        %v790 = vunpack.c.h.b16 %v631
        %v791 = vunpack.c.l.b16 %v632
        %v792 = vunpack.c.h.b16 %v632
        %v793 = vunpack.c.l.b16 %v633
        %v794 = vunpack.c.h.b16 %v633
        %v795 = vunpack.c.l.b16 %v634
        %v796 = vunpack.c.h.b16 %v634
        %v797 = vunpack.c.l.b16 %v635
        %v798 = vunpack.c.h.b16 %v635
        %v799 = vunpack.c.l.b16 %v636
        %v800 = vunpack.c.h.b16 %v636
        %v801 = vpack.c.b16 %v713, %v711
        %v802 = vpack.c.b16 %v714, %v712
        %v803 = vpack.c.b16 %v717, %v715
        %v804 = vpack.c.b16 %v718, %v716
        %v805 = vpack.c.b16 %v721, %v719
        %v806 = vpack.c.b16 %v722, %v720
        %v807 = vpack.c.b16 %v725, %v723
        %v808 = vpack.c.b16 %v726, %v724
        %v809 = vpack.c.b16 %v729, %v727
        %v810 = vpack.c.b16 %v730, %v728
        %v811 = vpack.c.b16 %v733, %v731
        %v812 = vpack.c.b16 %v734, %v732
        %v813 = vpack.c.b16 %v737, %v735
        %v814 = vpack.c.b16 %v738, %v736
        %v815 = vpack.c.b16 %v741, %v739
        %v816 = vpack.c.b16 %v742, %v740
        %v817 = vpack.c.b16 %v745, %v743
        %v818 = vpack.c.b16 %v746, %v744
        %v819 = vpack.c.b16 %v749, %v747
        %v820 = vpack.c.b16 %v750, %v748
        %v821 = vpack.c.b16 %v753, %v751
        %v822 = vpack.c.b16 %v754, %v752
        %v823 = vpack.c.b16 %v757, %v755
        %v824 = vpack.c.b16 %v758, %v756
        %v825 = vpack.c.b16 %v761, %v759
        %v826 = vpack.c.b16 %v762, %v760
        %v827 = vpack.c.b16 %v765, %v763
        %v828 = vpack.c.b16 %v766, %v764
        %v829 = vpack.c.b16 %v769, %v767
        %v830 = vpack.c.b16 %v770, %v768
        %v831 = vpack.c.b16 %v773, %v771
        %v832 = vpack.c.b16 %v774, %v772
        %v833 = vpack.c.b16 %v777, %v775
        %v834 = vpack.c.b16 %v778, %v776
        %v835 = vpack.c.b16 %v781, %v779
        %v836 = vpack.c.b16 %v782, %v780
        %v837 = vpack.c.b16 %v785, %v783
        %v838 = vpack.c.b16 %v786, %v784
        %v839 = vpack.c.b16 %v789, %v787
        %v840 = vpack.c.b16 %v790, %v788
        %v841 = vpack.c.b16 %v793, %v791
        %v842 = vpack.c.b16 %v794, %v792
        %v843 = vpack.c.b16 %v797, %v795
        %v844 = vpack.c.b16 %v798, %v796
        %v845 = vpack.c.b16 %v799, %v799
        %v846 = vpack.c.b16 %v800, %v800
        %vm891 = vcmask 850944
        %v893 = vsel %vm891, %v663, 0
        %vm895 = vcmask 1043456
        %v897 = vsel %vm895, %v845, 0
        %v900 = vsel %vm895, %v846, 0
        %902 = vmatprep.subr.bf16.mxu0 %v802
        %903 = vmatpush1.bf16.msra.mxu0 %v801
        %904 = vmatprep.subr.bf16.mxu0 %v804
        %905 = vmatpush1.bf16.msra.mxu0 %v803
        %906 = vmatprep.subr.bf16.mxu0 %v806
        %907 = vmatpush1.bf16.msra.mxu0 %v805
        %908 = vmatprep.subr.bf16.mxu0 %v808
        %909 = vmatpush1.bf16.msra.mxu0 %v807
        %910 = vmatprep.subr.bf16.mxu0 %v810
        %911 = vmatpush1.bf16.msra.mxu0 %v809
        %912 = vmatprep.subr.bf16.mxu0 %v812
        %913 = vmatpush1.bf16.msra.mxu0 %v811
        %914 = vmatprep.subr.bf16.mxu0 %v814
        %915 = vmatpush1.bf16.msra.mxu0 %v813
        %916 = vmatprep.subr.bf16.mxu0 %v816
        %917 = vmatpush1.bf16.msra.mxu0 %v815
        %918 = vmatprep.subr.bf16.mxu0 %v818
        %919 = vmatpush1.bf16.msra.mxu0 %v817
        %920 = vmatprep.subr.bf16.mxu0 %v820
        %921 = vmatpush1.bf16.msra.mxu0 %v819
        %922 = vmatprep.subr.bf16.mxu0 %v822
        %923 = vmatpush1.bf16.msra.mxu0 %v821
        %924 = vmatprep.subr.bf16.mxu0 %v824
        %925 = vmatpush1.bf16.msra.mxu0 %v823
        %926 = vmatprep.subr.bf16.mxu0 %v826
        %927 = vmatpush1.bf16.msra.mxu0 %v825
        %928 = vmatprep.subr.bf16.mxu0 %v828
        %929 = vmatpush1.bf16.msra.mxu0 %v827
        %930 = vmatprep.subr.bf16.mxu0 %v830
        %931 = vmatpush1.bf16.msra.mxu0 %v829
        %932 = vmatprep.subr.bf16.mxu0 %v832
        %933 = vmatpush1.bf16.msra.mxu0 %v831
        %934 = vmatprep.mubr.bf16.mxu0 %v662
        %935 = vmatmul.mubr.bf16.gmra.mrb[0].mxu0 %v661
        %v936 = vpop.f32.mrb[0].mxu0
        %v937 = vadd.f32 %v644, %v936
        %v938 = vpop.f32.mrb[0].mxu0
        %v939 = vadd.f32 %v648, %v938
        %v940 = vpop.f32.mrb[0].mxu0
        %v941 = vadd.f32 %v644, %v940
        %v942 = vpop.f32.mrb[0].mxu0
        %v943 = vadd.f32 %v648, %v942
        %944 = vdwg.mxu0
        %945 = vmatprep.subr.bf16.mxu0 %v834
        %946 = vmatpush1.bf16.msra.mxu0 %v833
        %947 = vmatprep.subr.bf16.mxu0 %v836
        %948 = vmatpush1.bf16.msra.mxu0 %v835
        %949 = vmatprep.subr.bf16.mxu0 %v838
        %950 = vmatpush1.bf16.msra.mxu0 %v837
        %951 = vmatprep.subr.bf16.mxu0 %v840
        %952 = vmatpush1.bf16.msra.mxu0 %v839
        %953 = vmatprep.subr.bf16.mxu0 %v842
        %954 = vmatpush1.bf16.msra.mxu0 %v841
        %955 = vmatprep.subr.bf16.mxu0 %v844
        %956 = vmatpush1.bf16.msra.mxu0 %v843
        %957 = vmatprep.subr.bf16.mxu0 %v900
        %958 = vmatpush1.bf16.msra.mxu0 %v897
        %959 = vmatprep.subr.bf16.mxu0 0
        %960 = vmatpush1.bf16.msra.mxu0 0
        %961 = vmatprep.subr.bf16.mxu0 0
        %962 = vmatpush1.bf16.msra.mxu0 0
        %963 = vmatprep.subr.bf16.mxu0 0
        %964 = vmatpush1.bf16.msra.mxu0 0
        %965 = vmatprep.subr.bf16.mxu0 0
        %966 = vmatpush1.bf16.msra.mxu0 0
        %967 = vmatprep.subr.bf16.mxu0 0
        %968 = vmatpush1.bf16.msra.mxu0 0
        %969 = vmatprep.subr.bf16.mxu0 0
        %970 = vmatpush1.bf16.msra.mxu0 0
        %971 = vmatprep.subr.bf16.mxu0 0
        %972 = vmatpush1.bf16.msra.mxu0 0
        %973 = vmatprep.subr.bf16.mxu0 0
        %974 = vmatpush1.bf16.msra.mxu0 0
        %975 = vmatprep.subr.bf16.mxu0 0
        %976 = vmatpush1.bf16.msra.mxu0 0
        %977 = vmatprep.mubr.bf16.mxu0 0
        %978 = vmatmul.mubr.bf16.gmra.mrb[0].mxu0 %v893
        %v979 = vpop.f32.mrb[0].mxu0
        %v980 = vadd.f32 %v937, %v979
        %v981 = vpop.f32.mrb[0].mxu0
        %v982 = vadd.f32 %v939, %v981
        %v983 = vpop.f32.mrb[0].mxu0
        %v984 = vadd.f32 %v941, %v983
        %v985 = vpop.f32.mrb[0].mxu0
        %v986 = vadd.f32 %v943, %v985
        %987 = vdwg.mxu0
        %v988 = vtanh.pop %v980
        %v989 = vtanh.pop %v982
        %v990 = vtanh.pop %v984
        %v991 = vtanh.pop %v986
        %v992 = vpack.c.bf16 %v990, %v988
        %v993 = vpack.c.bf16 %v991, %v989
        %s994 = smul.u32 %s38, 64
        %s995 = smul.addr %s994, 4
        %s996 = scalar_lea.vmem [#allocation8], %s995
        %v997 = vld [vmem:[%s996] sm:$0xff]
        %v998 = vld [vmem:[%s996 + $0x8] sm:$0xff]
        %v999 = vld [vmem:[%s996 + $0x10] sm:$0xff]
        %v1000 = vld [vmem:[%s996 + $0x18] sm:$0xff]
        %v1001 = vld [vmem:[%s996 + $0x20] sm:$0xff]
        %v1002 = vld [vmem:[%s996 + $0x28] sm:$0xff]
        %v1003 = vld [vmem:[%s996 + $0x30] sm:$0xff]
        %v1004 = vld [vmem:[%s996 + $0x38] sm:$0xff]
        %v1005 = vld [vmem:[%s996 + $0x40] sm:$0xff]
        %v1006 = vld [vmem:[%s996 + $0x48] sm:$0xff]
        %v1007 = vld [vmem:[%s996 + $0x50] sm:$0xff]
        %v1008 = vld [vmem:[%s996 + $0x58] sm:$0xff]
        %v1009 = vld [vmem:[%s996 + $0x60] sm:$0xff]
        %v1010 = vld [vmem:[%s996 + $0x68] sm:$0xff]
        %v1011 = vld [vmem:[%s996 + $0x70] sm:$0xff]
        %v1012 = vld [vmem:[%s996 + $0x78] sm:$0xff]
        %v1013 = vld [vmem:[%s996 + $0x80] sm:$0xff]
        %v1014 = vld [vmem:[%s996 + $0x88] sm:$0xff]
        %v1015 = vld [vmem:[%s996 + $0x90] sm:$0xff]
        %v1016 = vld [vmem:[%s996 + $0x98] sm:$0xff]
        %v1017 = vld [vmem:[%s996 + $0xa0] sm:$0xff]
        %v1018 = vld [vmem:[%s996 + $0xa8] sm:$0xff]
        %v1019 = vld [vmem:[%s996 + $0xb0] sm:$0xff]
        %v1020 = vld [vmem:[%s996 + $0xb8] sm:$0xff]
        %v1021 = vld [vmem:[%s996 + $0xc0] sm:$0xff]
        %v1022 = vld [vmem:[%s996 + $0xc8] sm:$0xff]
        %v1023 = vld [vmem:[%s996 + $0xd0] sm:$0xff]
        %v1024 = vld [vmem:[%s996 + $0xd8] sm:$0xff]
        %v1025 = vld [vmem:[%s996 + $0xe0] sm:$0xff]
        %v1026 = vld [vmem:[%s996 + $0xe8] sm:$0xff]
        %v1027 = vld [vmem:[%s996 + $0xf0] sm:$0xff]
        %v1028 = vld [vmem:[%s996 + $0xf8] sm:$0xff]
        %s1029 = scalar_lea.vmem [#allocation10], %s637
        %v1030 = vld [vmem:[%s1029] sm:$0x3]
        %v1032 = vlaneseq
        %v1033 = vshrl.u32 %v1032, 7
        %v1034 = vsub.s32 0, %v1033
        %v1035 = vrot.slane %v1030, %v1034
        %v1036 = vlaneseq
        %v1037 = vshrl.u32 %v1036, 7
        %v1038 = vsub.s32 1, %v1037
        %v1039 = vrot.slane %v1030, %v1038
        %v1074 = vunpack.c.l.b16 %v997
        %v1075 = vunpack.c.h.b16 %v997
        %v1076 = vunpack.c.l.b16 %v998
        %v1077 = vunpack.c.h.b16 %v998
        %v1078 = vunpack.c.l.b16 %v999
        %v1079 = vunpack.c.h.b16 %v999
        %v1080 = vunpack.c.l.b16 %v1000
        %v1081 = vunpack.c.h.b16 %v1000
        %v1082 = vunpack.c.l.b16 %v1001
        %v1083 = vunpack.c.h.b16 %v1001
        %v1084 = vunpack.c.l.b16 %v1002
        %v1085 = vunpack.c.h.b16 %v1002
        %v1086 = vunpack.c.l.b16 %v1003
        %v1087 = vunpack.c.h.b16 %v1003
        %v1088 = vunpack.c.l.b16 %v1004
        %v1089 = vunpack.c.h.b16 %v1004
        %v1090 = vunpack.c.l.b16 %v1005
        %v1091 = vunpack.c.h.b16 %v1005
        %v1092 = vunpack.c.l.b16 %v1006
        %v1093 = vunpack.c.h.b16 %v1006
        %v1094 = vunpack.c.l.b16 %v1007
        %v1095 = vunpack.c.h.b16 %v1007
        %v1096 = vunpack.c.l.b16 %v1008
        %v1097 = vunpack.c.h.b16 %v1008
        %v1098 = vunpack.c.l.b16 %v1009
        %v1099 = vunpack.c.h.b16 %v1009
        %v1100 = vunpack.c.l.b16 %v1010
        %v1101 = vunpack.c.h.b16 %v1010
        %v1102 = vunpack.c.l.b16 %v1011
        %v1103 = vunpack.c.h.b16 %v1011
        %v1104 = vunpack.c.l.b16 %v1012
        %v1105 = vunpack.c.h.b16 %v1012
        %v1106 = vunpack.c.l.b16 %v1013
        %v1107 = vunpack.c.h.b16 %v1013
        %v1108 = vunpack.c.l.b16 %v1014
        %v1109 = vunpack.c.h.b16 %v1014
        %v1110 = vunpack.c.l.b16 %v1015
        %v1111 = vunpack.c.h.b16 %v1015
        %v1112 = vunpack.c.l.b16 %v1016
        %v1113 = vunpack.c.h.b16 %v1016
        %v1114 = vunpack.c.l.b16 %v1017
        %v1115 = vunpack.c.h.b16 %v1017
        %v1116 = vunpack.c.l.b16 %v1018
        %v1117 = vunpack.c.h.b16 %v1018
        %v1118 = vunpack.c.l.b16 %v1019
        %v1119 = vunpack.c.h.b16 %v1019
        %v1120 = vunpack.c.l.b16 %v1020
        %v1121 = vunpack.c.h.b16 %v1020
        %v1122 = vunpack.c.l.b16 %v1021
        %v1123 = vunpack.c.h.b16 %v1021
        %v1124 = vunpack.c.l.b16 %v1022
        %v1125 = vunpack.c.h.b16 %v1022
        %v1126 = vunpack.c.l.b16 %v1023
        %v1127 = vunpack.c.h.b16 %v1023
        %v1128 = vunpack.c.l.b16 %v1024
        %v1129 = vunpack.c.h.b16 %v1024
        %v1130 = vunpack.c.l.b16 %v1025
        %v1131 = vunpack.c.h.b16 %v1025
        %v1132 = vunpack.c.l.b16 %v1026
        %v1133 = vunpack.c.h.b16 %v1026
        %v1134 = vunpack.c.l.b16 %v1027
        %v1135 = vunpack.c.h.b16 %v1027
        %v1136 = vunpack.c.l.b16 %v1028
        %v1137 = vunpack.c.h.b16 %v1028
        %v1138 = vpack.c.b16 %v1076, %v1074
        %v1139 = vpack.c.b16 %v1077, %v1075
        %v1140 = vpack.c.b16 %v1080, %v1078
        %v1141 = vpack.c.b16 %v1081, %v1079
        %v1142 = vpack.c.b16 %v1084, %v1082
        %v1143 = vpack.c.b16 %v1085, %v1083
        %v1144 = vpack.c.b16 %v1088, %v1086
        %v1145 = vpack.c.b16 %v1089, %v1087
        %v1146 = vpack.c.b16 %v1092, %v1090
        %v1147 = vpack.c.b16 %v1093, %v1091
        %v1148 = vpack.c.b16 %v1096, %v1094
        %v1149 = vpack.c.b16 %v1097, %v1095
        %v1150 = vpack.c.b16 %v1100, %v1098
        %v1151 = vpack.c.b16 %v1101, %v1099
        %v1152 = vpack.c.b16 %v1104, %v1102
        %v1153 = vpack.c.b16 %v1105, %v1103
        %v1154 = vpack.c.b16 %v1108, %v1106
        %v1155 = vpack.c.b16 %v1109, %v1107
        %v1156 = vpack.c.b16 %v1112, %v1110
        %v1157 = vpack.c.b16 %v1113, %v1111
        %v1158 = vpack.c.b16 %v1116, %v1114
        %v1159 = vpack.c.b16 %v1117, %v1115
        %v1160 = vpack.c.b16 %v1120, %v1118
        %v1161 = vpack.c.b16 %v1121, %v1119
        %v1162 = vpack.c.b16 %v1124, %v1122
        %v1163 = vpack.c.b16 %v1125, %v1123
        %v1164 = vpack.c.b16 %v1128, %v1126
        %v1165 = vpack.c.b16 %v1129, %v1127
        %v1166 = vpack.c.b16 %v1132, %v1130
        %v1167 = vpack.c.b16 %v1133, %v1131
        %v1168 = vpack.c.b16 %v1136, %v1134
        %v1169 = vpack.c.b16 %v1137, %v1135
        %1202 = vmatprep.subr.bf16.mxu0 %v1139
        %1203 = vmatpush1.bf16.msra.mxu0 %v1138
        %1204 = vmatprep.subr.bf16.mxu0 %v1141
        %1205 = vmatpush1.bf16.msra.mxu0 %v1140
        %1206 = vmatprep.subr.bf16.mxu0 %v1143
        %1207 = vmatpush1.bf16.msra.mxu0 %v1142
        %1208 = vmatprep.subr.bf16.mxu0 %v1145
        %1209 = vmatpush1.bf16.msra.mxu0 %v1144
        %1210 = vmatprep.subr.bf16.mxu0 %v1147
        %1211 = vmatpush1.bf16.msra.mxu0 %v1146
        %1212 = vmatprep.subr.bf16.mxu0 %v1149
        %1213 = vmatpush1.bf16.msra.mxu0 %v1148
        %1214 = vmatprep.subr.bf16.mxu0 %v1151
        %1215 = vmatpush1.bf16.msra.mxu0 %v1150
        %1216 = vmatprep.subr.bf16.mxu0 %v1153
        %1217 = vmatpush1.bf16.msra.mxu0 %v1152
        %1218 = vmatprep.subr.bf16.mxu0 %v1155
        %1219 = vmatpush1.bf16.msra.mxu0 %v1154
        %1220 = vmatprep.subr.bf16.mxu0 %v1157
        %1221 = vmatpush1.bf16.msra.mxu0 %v1156
        %1222 = vmatprep.subr.bf16.mxu0 %v1159
        %1223 = vmatpush1.bf16.msra.mxu0 %v1158
        %1224 = vmatprep.subr.bf16.mxu0 %v1161
        %1225 = vmatpush1.bf16.msra.mxu0 %v1160
        %1226 = vmatprep.subr.bf16.mxu0 %v1163
        %1227 = vmatpush1.bf16.msra.mxu0 %v1162
        %1228 = vmatprep.subr.bf16.mxu0 %v1165
        %1229 = vmatpush1.bf16.msra.mxu0 %v1164
        %1230 = vmatprep.subr.bf16.mxu0 %v1167
        %1231 = vmatpush1.bf16.msra.mxu0 %v1166
        %1232 = vmatprep.subr.bf16.mxu0 %v1169
        %1233 = vmatpush1.bf16.msra.mxu0 %v1168
        %1234 = vmatprep.mubr.bf16.mxu0 %v993
        %1235 = vmatmul.mubr.bf16.gmra.mrb[0].mxu0 %v992
        %v1236 = vpop.f32.mrb[0].mxu0
        %v1237 = vadd.f32 %v1035, %v1236
        %v1238 = vpop.f32.mrb[0].mxu0
        %v1239 = vadd.f32 %v1039, %v1238
        %v1240 = vpop.f32.mrb[0].mxu0
        %v1241 = vadd.f32 %v1035, %v1240
        %v1242 = vpop.f32.mrb[0].mxu0
        %v1243 = vadd.f32 %v1039, %v1242
        %1244 = vdwg.mxu0
        %v1245 = vtanh.pop %v1237
        %v1246 = vtanh.pop %v1239
        %v1247 = vtanh.pop %v1241
        %v1248 = vtanh.pop %v1243
        %v1249 = vpack.c.bf16 %v1247, %v1245
        %v1250 = vpack.c.bf16 %v1248, %v1246
        %s1251 = smul.addr %s994, 4
        %s1252 = scalar_lea.vmem [#allocation11], %s1251
        %v1253 = vld [vmem:[%s1252] sm:$0xff]
        %v1254 = vld [vmem:[%s1252 + $0x8] sm:$0xff]
        %v1255 = vld [vmem:[%s1252 + $0x10] sm:$0xff]
        %v1256 = vld [vmem:[%s1252 + $0x18] sm:$0xff]
        %v1257 = vld [vmem:[%s1252 + $0x20] sm:$0xff]
        %v1258 = vld [vmem:[%s1252 + $0x28] sm:$0xff]
        %v1259 = vld [vmem:[%s1252 + $0x30] sm:$0xff]
        %v1260 = vld [vmem:[%s1252 + $0x38] sm:$0xff]
        %v1261 = vld [vmem:[%s1252 + $0x40] sm:$0xff]
        %v1262 = vld [vmem:[%s1252 + $0x48] sm:$0xff]
        %v1263 = vld [vmem:[%s1252 + $0x50] sm:$0xff]
        %v1264 = vld [vmem:[%s1252 + $0x58] sm:$0xff]
        %v1265 = vld [vmem:[%s1252 + $0x60] sm:$0xff]
        %v1266 = vld [vmem:[%s1252 + $0x68] sm:$0xff]
        %v1267 = vld [vmem:[%s1252 + $0x70] sm:$0xff]
        %v1268 = vld [vmem:[%s1252 + $0x78] sm:$0xff]
        %v1269 = vld [vmem:[%s1252 + $0x80] sm:$0xff]
        %v1270 = vld [vmem:[%s1252 + $0x88] sm:$0xff]
        %v1271 = vld [vmem:[%s1252 + $0x90] sm:$0xff]
        %v1272 = vld [vmem:[%s1252 + $0x98] sm:$0xff]
        %v1273 = vld [vmem:[%s1252 + $0xa0] sm:$0xff]
        %v1274 = vld [vmem:[%s1252 + $0xa8] sm:$0xff]
        %v1275 = vld [vmem:[%s1252 + $0xb0] sm:$0xff]
        %v1276 = vld [vmem:[%s1252 + $0xb8] sm:$0xff]
        %v1277 = vld [vmem:[%s1252 + $0xc0] sm:$0xff]
        %v1278 = vld [vmem:[%s1252 + $0xc8] sm:$0xff]
        %v1279 = vld [vmem:[%s1252 + $0xd0] sm:$0xff]
        %v1280 = vld [vmem:[%s1252 + $0xd8] sm:$0xff]
        %v1281 = vld [vmem:[%s1252 + $0xe0] sm:$0xff]
        %v1282 = vld [vmem:[%s1252 + $0xe8] sm:$0xff]
        %v1283 = vld [vmem:[%s1252 + $0xf0] sm:$0xff]
        %v1284 = vld [vmem:[%s1252 + $0xf8] sm:$0xff]
        %s1285 = scalar_lea.vmem [#allocation13], %s637
        %v1286 = vld [vmem:[%s1285] sm:$0x3]
        %v1288 = vlaneseq
        %v1289 = vshrl.u32 %v1288, 7
        %v1290 = vsub.s32 0, %v1289
        %v1291 = vrot.slane %v1286, %v1290
        %v1292 = vlaneseq
        %v1293 = vshrl.u32 %v1292, 7
        %v1294 = vsub.s32 1, %v1293
        %v1295 = vrot.slane %v1286, %v1294
        %v1330 = vunpack.c.l.b16 %v1253
        %v1331 = vunpack.c.h.b16 %v1253
        %v1332 = vunpack.c.l.b16 %v1254
        %v1333 = vunpack.c.h.b16 %v1254
        %v1334 = vunpack.c.l.b16 %v1255
        %v1335 = vunpack.c.h.b16 %v1255
        %v1336 = vunpack.c.l.b16 %v1256
        %v1337 = vunpack.c.h.b16 %v1256
        %v1338 = vunpack.c.l.b16 %v1257
        %v1339 = vunpack.c.h.b16 %v1257
        %v1340 = vunpack.c.l.b16 %v1258
        %v1341 = vunpack.c.h.b16 %v1258
        %v1342 = vunpack.c.l.b16 %v1259
        %v1343 = vunpack.c.h.b16 %v1259
        %v1344 = vunpack.c.l.b16 %v1260
        %v1345 = vunpack.c.h.b16 %v1260
        %v1346 = vunpack.c.l.b16 %v1261
        %v1347 = vunpack.c.h.b16 %v1261
        %v1348 = vunpack.c.l.b16 %v1262
        %v1349 = vunpack.c.h.b16 %v1262
        %v1350 = vunpack.c.l.b16 %v1263
        %v1351 = vunpack.c.h.b16 %v1263
        %v1352 = vunpack.c.l.b16 %v1264
        %v1353 = vunpack.c.h.b16 %v1264
        %v1354 = vunpack.c.l.b16 %v1265
        %v1355 = vunpack.c.h.b16 %v1265
        %v1356 = vunpack.c.l.b16 %v1266
        %v1357 = vunpack.c.h.b16 %v1266
        %v1358 = vunpack.c.l.b16 %v1267
        %v1359 = vunpack.c.h.b16 %v1267
        %v1360 = vunpack.c.l.b16 %v1268
        %v1361 = vunpack.c.h.b16 %v1268
        %v1362 = vunpack.c.l.b16 %v1269
        %v1363 = vunpack.c.h.b16 %v1269
        %v1364 = vunpack.c.l.b16 %v1270
        %v1365 = vunpack.c.h.b16 %v1270
        %v1366 = vunpack.c.l.b16 %v1271
        %v1367 = vunpack.c.h.b16 %v1271
        %v1368 = vunpack.c.l.b16 %v1272
        %v1369 = vunpack.c.h.b16 %v1272
        %v1370 = vunpack.c.l.b16 %v1273
        %v1371 = vunpack.c.h.b16 %v1273
        %v1372 = vunpack.c.l.b16 %v1274
        %v1373 = vunpack.c.h.b16 %v1274
        %v1374 = vunpack.c.l.b16 %v1275
        %v1375 = vunpack.c.h.b16 %v1275
        %v1376 = vunpack.c.l.b16 %v1276
        %v1377 = vunpack.c.h.b16 %v1276
        %v1378 = vunpack.c.l.b16 %v1277
        %v1379 = vunpack.c.h.b16 %v1277
        %v1380 = vunpack.c.l.b16 %v1278
        %v1381 = vunpack.c.h.b16 %v1278
        %v1382 = vunpack.c.l.b16 %v1279
        %v1383 = vunpack.c.h.b16 %v1279
        %v1384 = vunpack.c.l.b16 %v1280
        %v1385 = vunpack.c.h.b16 %v1280
        %v1386 = vunpack.c.l.b16 %v1281
        %v1387 = vunpack.c.h.b16 %v1281
        %v1388 = vunpack.c.l.b16 %v1282
        %v1389 = vunpack.c.h.b16 %v1282
        %v1390 = vunpack.c.l.b16 %v1283
        %v1391 = vunpack.c.h.b16 %v1283
        %v1392 = vunpack.c.l.b16 %v1284
        %v1393 = vunpack.c.h.b16 %v1284
        %v1394 = vpack.c.b16 %v1332, %v1330
        %v1395 = vpack.c.b16 %v1333, %v1331
        %v1396 = vpack.c.b16 %v1336, %v1334
        %v1397 = vpack.c.b16 %v1337, %v1335
        %v1398 = vpack.c.b16 %v1340, %v1338
        %v1399 = vpack.c.b16 %v1341, %v1339
        %v1400 = vpack.c.b16 %v1344, %v1342
        %v1401 = vpack.c.b16 %v1345, %v1343
        %v1402 = vpack.c.b16 %v1348, %v1346
        %v1403 = vpack.c.b16 %v1349, %v1347
        %v1404 = vpack.c.b16 %v1352, %v1350
        %v1405 = vpack.c.b16 %v1353, %v1351
        %v1406 = vpack.c.b16 %v1356, %v1354
        %v1407 = vpack.c.b16 %v1357, %v1355
        %v1408 = vpack.c.b16 %v1360, %v1358
        %v1409 = vpack.c.b16 %v1361, %v1359
        %v1410 = vpack.c.b16 %v1364, %v1362
        %v1411 = vpack.c.b16 %v1365, %v1363
        %v1412 = vpack.c.b16 %v1368, %v1366
        %v1413 = vpack.c.b16 %v1369, %v1367
        %v1414 = vpack.c.b16 %v1372, %v1370
        %v1415 = vpack.c.b16 %v1373, %v1371
        %v1416 = vpack.c.b16 %v1376, %v1374
        %v1417 = vpack.c.b16 %v1377, %v1375
        %v1418 = vpack.c.b16 %v1380, %v1378
        %v1419 = vpack.c.b16 %v1381, %v1379
        %v1420 = vpack.c.b16 %v1384, %v1382
        %v1421 = vpack.c.b16 %v1385, %v1383
        %v1422 = vpack.c.b16 %v1388, %v1386
        %v1423 = vpack.c.b16 %v1389, %v1387
        %v1424 = vpack.c.b16 %v1392, %v1390
        %v1425 = vpack.c.b16 %v1393, %v1391
        %1458 = vmatprep.subr.bf16.mxu0 %v1395
        %1459 = vmatpush1.bf16.msra.mxu0 %v1394
        %1460 = vmatprep.subr.bf16.mxu0 %v1397
        %1461 = vmatpush1.bf16.msra.mxu0 %v1396
        %1462 = vmatprep.subr.bf16.mxu0 %v1399
        %1463 = vmatpush1.bf16.msra.mxu0 %v1398
        %1464 = vmatprep.subr.bf16.mxu0 %v1401
        %1465 = vmatpush1.bf16.msra.mxu0 %v1400
        %1466 = vmatprep.subr.bf16.mxu0 %v1403
        %1467 = vmatpush1.bf16.msra.mxu0 %v1402
        %1468 = vmatprep.subr.bf16.mxu0 %v1405
        %1469 = vmatpush1.bf16.msra.mxu0 %v1404
        %1470 = vmatprep.subr.bf16.mxu0 %v1407
        %1471 = vmatpush1.bf16.msra.mxu0 %v1406
        %1472 = vmatprep.subr.bf16.mxu0 %v1409
        %1473 = vmatpush1.bf16.msra.mxu0 %v1408
        %1474 = vmatprep.subr.bf16.mxu0 %v1411
        %1475 = vmatpush1.bf16.msra.mxu0 %v1410
        %1476 = vmatprep.subr.bf16.mxu0 %v1413
        %1477 = vmatpush1.bf16.msra.mxu0 %v1412
        %1478 = vmatprep.subr.bf16.mxu0 %v1415
        %1479 = vmatpush1.bf16.msra.mxu0 %v1414
        %1480 = vmatprep.subr.bf16.mxu0 %v1417
        %1481 = vmatpush1.bf16.msra.mxu0 %v1416
        %1482 = vmatprep.subr.bf16.mxu0 %v1419
        %1483 = vmatpush1.bf16.msra.mxu0 %v1418
        %1484 = vmatprep.subr.bf16.mxu0 %v1421
        %1485 = vmatpush1.bf16.msra.mxu0 %v1420
        %1486 = vmatprep.subr.bf16.mxu0 %v1423
        %1487 = vmatpush1.bf16.msra.mxu0 %v1422
        %1488 = vmatprep.subr.bf16.mxu0 %v1425
        %1489 = vmatpush1.bf16.msra.mxu0 %v1424
        %1490 = vmatprep.mubr.bf16.mxu0 %v1250
        %1491 = vmatmul.mubr.bf16.gmra.mrb[0].mxu0 %v1249
        %v1492 = vpop.f32.mrb[0].mxu0
        %v1493 = vadd.f32 %v1291, %v1492
        %v1494 = vpop.f32.mrb[0].mxu0
        %v1495 = vadd.f32 %v1295, %v1494
        %v1496 = vpop.f32.mrb[0].mxu0
        %v1497 = vadd.f32 %v1291, %v1496
        %v1498 = vpop.f32.mrb[0].mxu0
        %v1499 = vadd.f32 %v1295, %v1498
        %1500 = vdwg.mxu0
        %v1501 = vtanh.pop %v1493
        %v1502 = vtanh.pop %v1495
        %v1503 = vtanh.pop %v1497
        %v1504 = vtanh.pop %v1499
        %v1505 = vpack.c.bf16 %v1503, %v1501
        %v1506 = vpack.c.bf16 %v1504, %v1502
        %s1507 = smul.addr %s994, 4
        %s1508 = scalar_lea.vmem [#allocation14], %s1507
        %v1509 = vld [vmem:[%s1508] sm:$0xff]
        %v1510 = vld [vmem:[%s1508 + $0x8] sm:$0xff]
        %v1511 = vld [vmem:[%s1508 + $0x10] sm:$0xff]
        %v1512 = vld [vmem:[%s1508 + $0x18] sm:$0xff]
        %v1513 = vld [vmem:[%s1508 + $0x20] sm:$0xff]
        %v1514 = vld [vmem:[%s1508 + $0x28] sm:$0xff]
        %v1515 = vld [vmem:[%s1508 + $0x30] sm:$0xff]
        %v1516 = vld [vmem:[%s1508 + $0x38] sm:$0xff]
        %v1517 = vld [vmem:[%s1508 + $0x40] sm:$0xff]
        %v1518 = vld [vmem:[%s1508 + $0x48] sm:$0xff]
        %v1519 = vld [vmem:[%s1508 + $0x50] sm:$0xff]
        %v1520 = vld [vmem:[%s1508 + $0x58] sm:$0xff]
        %v1521 = vld [vmem:[%s1508 + $0x60] sm:$0xff]
        %v1522 = vld [vmem:[%s1508 + $0x68] sm:$0xff]
        %v1523 = vld [vmem:[%s1508 + $0x70] sm:$0xff]
        %v1524 = vld [vmem:[%s1508 + $0x78] sm:$0xff]
        %v1525 = vld [vmem:[%s1508 + $0x80] sm:$0xff]
        %v1526 = vld [vmem:[%s1508 + $0x88] sm:$0xff]
        %v1527 = vld [vmem:[%s1508 + $0x90] sm:$0xff]
        %v1528 = vld [vmem:[%s1508 + $0x98] sm:$0xff]
        %v1529 = vld [vmem:[%s1508 + $0xa0] sm:$0xff]
        %v1530 = vld [vmem:[%s1508 + $0xa8] sm:$0xff]
        %v1531 = vld [vmem:[%s1508 + $0xb0] sm:$0xff]
        %v1532 = vld [vmem:[%s1508 + $0xb8] sm:$0xff]
        %v1533 = vld [vmem:[%s1508 + $0xc0] sm:$0xff]
        %v1534 = vld [vmem:[%s1508 + $0xc8] sm:$0xff]
        %v1535 = vld [vmem:[%s1508 + $0xd0] sm:$0xff]
        %v1536 = vld [vmem:[%s1508 + $0xd8] sm:$0xff]
        %v1537 = vld [vmem:[%s1508 + $0xe0] sm:$0xff]
        %v1538 = vld [vmem:[%s1508 + $0xe8] sm:$0xff]
        %v1539 = vld [vmem:[%s1508 + $0xf0] sm:$0xff]
        %v1540 = vld [vmem:[%s1508 + $0xf8] sm:$0xff]
        %s1541 = scalar_lea.vmem [#allocation16], %s637
        %v1542 = vld [vmem:[%s1541] sm:$0x3]
        %v1544 = vlaneseq
        %v1545 = vshrl.u32 %v1544, 7
        %v1546 = vsub.s32 0, %v1545
        %v1547 = vrot.slane %v1542, %v1546
        %v1548 = vlaneseq
        %v1549 = vshrl.u32 %v1548, 7
        %v1550 = vsub.s32 1, %v1549
        %v1551 = vrot.slane %v1542, %v1550
        %v1586 = vunpack.c.l.b16 %v1509
        %v1587 = vunpack.c.h.b16 %v1509
        %v1588 = vunpack.c.l.b16 %v1510
        %v1589 = vunpack.c.h.b16 %v1510
        %v1590 = vunpack.c.l.b16 %v1511
        %v1591 = vunpack.c.h.b16 %v1511
        %v1592 = vunpack.c.l.b16 %v1512
        %v1593 = vunpack.c.h.b16 %v1512
        %v1594 = vunpack.c.l.b16 %v1513
        %v1595 = vunpack.c.h.b16 %v1513
        %v1596 = vunpack.c.l.b16 %v1514
        %v1597 = vunpack.c.h.b16 %v1514
        %v1598 = vunpack.c.l.b16 %v1515
        %v1599 = vunpack.c.h.b16 %v1515
        %v1600 = vunpack.c.l.b16 %v1516
        %v1601 = vunpack.c.h.b16 %v1516
        %v1602 = vunpack.c.l.b16 %v1517
        %v1603 = vunpack.c.h.b16 %v1517
        %v1604 = vunpack.c.l.b16 %v1518
        %v1605 = vunpack.c.h.b16 %v1518
        %v1606 = vunpack.c.l.b16 %v1519
        %v1607 = vunpack.c.h.b16 %v1519
        %v1608 = vunpack.c.l.b16 %v1520
        %v1609 = vunpack.c.h.b16 %v1520
        %v1610 = vunpack.c.l.b16 %v1521
        %v1611 = vunpack.c.h.b16 %v1521
        %v1612 = vunpack.c.l.b16 %v1522
        %v1613 = vunpack.c.h.b16 %v1522
        %v1614 = vunpack.c.l.b16 %v1523
        %v1615 = vunpack.c.h.b16 %v1523
        %v1616 = vunpack.c.l.b16 %v1524
        %v1617 = vunpack.c.h.b16 %v1524
        %v1618 = vunpack.c.l.b16 %v1525
        %v1619 = vunpack.c.h.b16 %v1525
        %v1620 = vunpack.c.l.b16 %v1526
        %v1621 = vunpack.c.h.b16 %v1526
        %v1622 = vunpack.c.l.b16 %v1527
        %v1623 = vunpack.c.h.b16 %v1527
        %v1624 = vunpack.c.l.b16 %v1528
        %v1625 = vunpack.c.h.b16 %v1528
        %v1626 = vunpack.c.l.b16 %v1529
        %v1627 = vunpack.c.h.b16 %v1529
        %v1628 = vunpack.c.l.b16 %v1530
        %v1629 = vunpack.c.h.b16 %v1530
        %v1630 = vunpack.c.l.b16 %v1531
        %v1631 = vunpack.c.h.b16 %v1531
        %v1632 = vunpack.c.l.b16 %v1532
        %v1633 = vunpack.c.h.b16 %v1532
        %v1634 = vunpack.c.l.b16 %v1533
        %v1635 = vunpack.c.h.b16 %v1533
        %v1636 = vunpack.c.l.b16 %v1534
        %v1637 = vunpack.c.h.b16 %v1534
        %v1638 = vunpack.c.l.b16 %v1535
        %v1639 = vunpack.c.h.b16 %v1535
        %v1640 = vunpack.c.l.b16 %v1536
        %v1641 = vunpack.c.h.b16 %v1536
        %v1642 = vunpack.c.l.b16 %v1537
        %v1643 = vunpack.c.h.b16 %v1537
        %v1644 = vunpack.c.l.b16 %v1538
        %v1645 = vunpack.c.h.b16 %v1538
        %v1646 = vunpack.c.l.b16 %v1539
        %v1647 = vunpack.c.h.b16 %v1539
        %v1648 = vunpack.c.l.b16 %v1540
        %v1649 = vunpack.c.h.b16 %v1540
        %v1650 = vpack.c.b16 %v1588, %v1586
        %v1651 = vpack.c.b16 %v1589, %v1587
        %v1652 = vpack.c.b16 %v1592, %v1590
        %v1653 = vpack.c.b16 %v1593, %v1591
        %v1654 = vpack.c.b16 %v1596, %v1594
        %v1655 = vpack.c.b16 %v1597, %v1595
        %v1656 = vpack.c.b16 %v1600, %v1598
        %v1657 = vpack.c.b16 %v1601, %v1599
        %v1658 = vpack.c.b16 %v1604, %v1602
        %v1659 = vpack.c.b16 %v1605, %v1603
        %v1660 = vpack.c.b16 %v1608, %v1606
        %v1661 = vpack.c.b16 %v1609, %v1607
        %v1662 = vpack.c.b16 %v1612, %v1610
        %v1663 = vpack.c.b16 %v1613, %v1611
        %v1664 = vpack.c.b16 %v1616, %v1614
        %v1665 = vpack.c.b16 %v1617, %v1615
        %v1666 = vpack.c.b16 %v1620, %v1618
        %v1667 = vpack.c.b16 %v1621, %v1619
        %v1668 = vpack.c.b16 %v1624, %v1622
        %v1669 = vpack.c.b16 %v1625, %v1623
        %v1670 = vpack.c.b16 %v1628, %v1626
        %v1671 = vpack.c.b16 %v1629, %v1627
        %v1672 = vpack.c.b16 %v1632, %v1630
        %v1673 = vpack.c.b16 %v1633, %v1631
        %v1674 = vpack.c.b16 %v1636, %v1634
        %v1675 = vpack.c.b16 %v1637, %v1635
        %v1676 = vpack.c.b16 %v1640, %v1638
        %v1677 = vpack.c.b16 %v1641, %v1639
        %v1678 = vpack.c.b16 %v1644, %v1642
        %v1679 = vpack.c.b16 %v1645, %v1643
        %v1680 = vpack.c.b16 %v1648, %v1646
        %v1681 = vpack.c.b16 %v1649, %v1647
        %1714 = vmatprep.subr.bf16.mxu0 %v1651
        %1715 = vmatpush1.bf16.msra.mxu0 %v1650
        %1716 = vmatprep.subr.bf16.mxu0 %v1653
        %1717 = vmatpush1.bf16.msra.mxu0 %v1652
        %1718 = vmatprep.subr.bf16.mxu0 %v1655
        %1719 = vmatpush1.bf16.msra.mxu0 %v1654
        %1720 = vmatprep.subr.bf16.mxu0 %v1657
        %1721 = vmatpush1.bf16.msra.mxu0 %v1656
        %1722 = vmatprep.subr.bf16.mxu0 %v1659
        %1723 = vmatpush1.bf16.msra.mxu0 %v1658
        %1724 = vmatprep.subr.bf16.mxu0 %v1661
        %1725 = vmatpush1.bf16.msra.mxu0 %v1660
        %1726 = vmatprep.subr.bf16.mxu0 %v1663
        %1727 = vmatpush1.bf16.msra.mxu0 %v1662
        %1728 = vmatprep.subr.bf16.mxu0 %v1665
        %1729 = vmatpush1.bf16.msra.mxu0 %v1664
        %1730 = vmatprep.subr.bf16.mxu0 %v1667
        %1731 = vmatpush1.bf16.msra.mxu0 %v1666
        %1732 = vmatprep.subr.bf16.mxu0 %v1669
        %1733 = vmatpush1.bf16.msra.mxu0 %v1668
        %1734 = vmatprep.subr.bf16.mxu0 %v1671
        %1735 = vmatpush1.bf16.msra.mxu0 %v1670
        %1736 = vmatprep.subr.bf16.mxu0 %v1673
        %1737 = vmatpush1.bf16.msra.mxu0 %v1672
        %1738 = vmatprep.subr.bf16.mxu0 %v1675
        %1739 = vmatpush1.bf16.msra.mxu0 %v1674
        %1740 = vmatprep.subr.bf16.mxu0 %v1677
        %1741 = vmatpush1.bf16.msra.mxu0 %v1676
        %1742 = vmatprep.subr.bf16.mxu0 %v1679
        %1743 = vmatpush1.bf16.msra.mxu0 %v1678
        %1744 = vmatprep.subr.bf16.mxu0 %v1681
        %1745 = vmatpush1.bf16.msra.mxu0 %v1680
        %1746 = vmatprep.mubr.bf16.mxu0 %v1506
        %1747 = vmatmul.mubr.bf16.gmra.mrb[0].mxu0 %v1505
        %v1748 = vpop.f32.mrb[0].mxu0
        %v1749 = vadd.f32 %v1547, %v1748
        %v1750 = vpop.f32.mrb[0].mxu0
        %v1751 = vadd.f32 %v1551, %v1750
        %v1752 = vpop.f32.mrb[0].mxu0
        %v1753 = vadd.f32 %v1547, %v1752
        %v1754 = vpop.f32.mrb[0].mxu0
        %v1755 = vadd.f32 %v1551, %v1754
        %1756 = vdwg.mxu0
        %v1757 = vtanh.pop %v1749
        %v1758 = vtanh.pop %v1751
        %v1759 = vtanh.pop %v1753
        %v1760 = vtanh.pop %v1755
        %v1761 = vpack.c.bf16 %v1759, %v1757
        %v1762 = vpack.c.bf16 %v1760, %v1758
        %s1763 = smul.u32 %s38, 96
        %s1764 = smul.addr %s1763, 4
        %s1765 = scalar_lea.vmem [#allocation17], %s1764
        %v1766 = vld [vmem:[%s1765] sm:$0xff]
        %v1767 = vld [vmem:[%s1765 + $0x8] sm:$0xf]
        %v1768 = vld [vmem:[%s1765 + $0xc] sm:$0xff]
        %v1769 = vld [vmem:[%s1765 + $0x14] sm:$0xf]
        %v1770 = vld [vmem:[%s1765 + $0x18] sm:$0xff]
        %v1771 = vld [vmem:[%s1765 + $0x20] sm:$0xf]
        %v1772 = vld [vmem:[%s1765 + $0x24] sm:$0xff]
        %v1773 = vld [vmem:[%s1765 + $0x2c] sm:$0xf]
        %v1774 = vld [vmem:[%s1765 + $0x30] sm:$0xff]
        %v1775 = vld [vmem:[%s1765 + $0x38] sm:$0xf]
        %v1776 = vld [vmem:[%s1765 + $0x3c] sm:$0xff]
        %v1777 = vld [vmem:[%s1765 + $0x44] sm:$0xf]
        %v1778 = vld [vmem:[%s1765 + $0x48] sm:$0xff]
        %v1779 = vld [vmem:[%s1765 + $0x50] sm:$0xf]
        %v1780 = vld [vmem:[%s1765 + $0x54] sm:$0xff]
        %v1781 = vld [vmem:[%s1765 + $0x5c] sm:$0xf]
        %v1782 = vld [vmem:[%s1765 + $0x60] sm:$0xff]
        %v1783 = vld [vmem:[%s1765 + $0x68] sm:$0xf]
        %v1784 = vld [vmem:[%s1765 + $0x6c] sm:$0xff]
        %v1785 = vld [vmem:[%s1765 + $0x74] sm:$0xf]
        %v1786 = vld [vmem:[%s1765 + $0x78] sm:$0xff]
        %v1787 = vld [vmem:[%s1765 + $0x80] sm:$0xf]
        %v1788 = vld [vmem:[%s1765 + $0x84] sm:$0xff]
        %v1789 = vld [vmem:[%s1765 + $0x8c] sm:$0xf]
        %v1790 = vld [vmem:[%s1765 + $0x90] sm:$0xff]
        %v1791 = vld [vmem:[%s1765 + $0x98] sm:$0xf]
        %v1792 = vld [vmem:[%s1765 + $0x9c] sm:$0xff]
        %v1793 = vld [vmem:[%s1765 + $0xa4] sm:$0xf]
        %v1794 = vld [vmem:[%s1765 + $0xa8] sm:$0xff]
        %v1795 = vld [vmem:[%s1765 + $0xb0] sm:$0xf]
        %v1796 = vld [vmem:[%s1765 + $0xb4] sm:$0xff]
        %v1797 = vld [vmem:[%s1765 + $0xbc] sm:$0xf]
        %v1798 = vld [vmem:[%s1765 + $0xc0] sm:$0xff]
        %v1799 = vld [vmem:[%s1765 + $0xc8] sm:$0xf]
        %v1800 = vld [vmem:[%s1765 + $0xcc] sm:$0xff]
        %v1801 = vld [vmem:[%s1765 + $0xd4] sm:$0xf]
        %v1802 = vld [vmem:[%s1765 + $0xd8] sm:$0xff]
        %v1803 = vld [vmem:[%s1765 + $0xe0] sm:$0xf]
        %v1804 = vld [vmem:[%s1765 + $0xe4] sm:$0xff]
        %v1805 = vld [vmem:[%s1765 + $0xec] sm:$0xf]
        %v1806 = vld [vmem:[%s1765 + $0xf0] sm:$0xff]
        %v1807 = vld [vmem:[%s1765 + $0xf8] sm:$0xf]
        %v1808 = vld [vmem:[%s1765 + $0xfc] sm:$0xff]
        %v1809 = vld [vmem:[%s1765 + $0x104] sm:$0xf]
        %v1810 = vld [vmem:[%s1765 + $0x108] sm:$0xff]
        %v1811 = vld [vmem:[%s1765 + $0x110] sm:$0xf]
        %v1812 = vld [vmem:[%s1765 + $0x114] sm:$0xff]
        %v1813 = vld [vmem:[%s1765 + $0x11c] sm:$0xf]
        %v1814 = vld [vmem:[%s1765 + $0x120] sm:$0xff]
        %v1815 = vld [vmem:[%s1765 + $0x128] sm:$0xf]
        %v1816 = vld [vmem:[%s1765 + $0x12c] sm:$0xff]
        %v1817 = vld [vmem:[%s1765 + $0x134] sm:$0xf]
        %v1818 = vld [vmem:[%s1765 + $0x138] sm:$0xff]
        %v1819 = vld [vmem:[%s1765 + $0x140] sm:$0xf]
        %v1820 = vld [vmem:[%s1765 + $0x144] sm:$0xff]
        %v1821 = vld [vmem:[%s1765 + $0x14c] sm:$0xf]
        %v1822 = vld [vmem:[%s1765 + $0x150] sm:$0xff]
        %v1823 = vld [vmem:[%s1765 + $0x158] sm:$0xf]
        %v1824 = vld [vmem:[%s1765 + $0x15c] sm:$0xff]
        %v1825 = vld [vmem:[%s1765 + $0x164] sm:$0xf]
        %v1826 = vld [vmem:[%s1765 + $0x168] sm:$0xff]
        %v1827 = vld [vmem:[%s1765 + $0x170] sm:$0xf]
        %v1828 = vld [vmem:[%s1765 + $0x174] sm:$0xff]
        %v1829 = vld [vmem:[%s1765 + $0x17c] sm:$0xf]
        %s1830 = smul.u32 %s38, 3
        %s1831 = scalar_lea.vmem %s10, %s1830
        %v1832 = vld [vmem:[%s1831] sm:$0x7]
        %v1834 = vlaneseq
        %v1835 = vshrl.u32 %v1834, 7
        %v1836 = vsub.s32 0, %v1835
        %v1837 = vrot.slane %v1832, %v1836
        %v1838 = vlaneseq
        %v1839 = vshrl.u32 %v1838, 7
        %v1840 = vsub.s32 1, %v1839
        %v1841 = vrot.slane %v1832, %v1840
        %v1842 = vlaneseq
        %v1843 = vshrl.u32 %v1842, 7
        %v1844 = vsub.s32 2, %v1843
        %v1845 = vrot.slane %v1832, %v1844
        %v1913 = vunpack.c.l.b16 %v1766
        %v1914 = vunpack.c.h.b16 %v1766
        %v1915 = vunpack.c.l.b16 %v1767
        %v1916 = vunpack.c.l.b16 %v1768
        %v1917 = vunpack.c.h.b16 %v1768
        %v1918 = vunpack.c.l.b16 %v1769
        %v1919 = vunpack.c.l.b16 %v1770
        %v1920 = vunpack.c.h.b16 %v1770
        %v1921 = vunpack.c.l.b16 %v1771
        %v1922 = vunpack.c.l.b16 %v1772
        %v1923 = vunpack.c.h.b16 %v1772
        %v1924 = vunpack.c.l.b16 %v1773
        %v1925 = vunpack.c.l.b16 %v1774
        %v1926 = vunpack.c.h.b16 %v1774
        %v1927 = vunpack.c.l.b16 %v1775
        %v1928 = vunpack.c.l.b16 %v1776
        %v1929 = vunpack.c.h.b16 %v1776
        %v1930 = vunpack.c.l.b16 %v1777
        %v1931 = vunpack.c.l.b16 %v1778
        %v1932 = vunpack.c.h.b16 %v1778
        %v1933 = vunpack.c.l.b16 %v1779
        %v1934 = vunpack.c.l.b16 %v1780
        %v1935 = vunpack.c.h.b16 %v1780
        %v1936 = vunpack.c.l.b16 %v1781
        %v1937 = vunpack.c.l.b16 %v1782
        %v1938 = vunpack.c.h.b16 %v1782
        %v1939 = vunpack.c.l.b16 %v1783
        %v1940 = vunpack.c.l.b16 %v1784
        %v1941 = vunpack.c.h.b16 %v1784
        %v1942 = vunpack.c.l.b16 %v1785
        %v1943 = vunpack.c.l.b16 %v1786
        %v1944 = vunpack.c.h.b16 %v1786
        %v1945 = vunpack.c.l.b16 %v1787
        %v1946 = vunpack.c.l.b16 %v1788
        %v1947 = vunpack.c.h.b16 %v1788
        %v1948 = vunpack.c.l.b16 %v1789
        %v1949 = vunpack.c.l.b16 %v1790
        %v1950 = vunpack.c.h.b16 %v1790
        %v1951 = vunpack.c.l.b16 %v1791
        %v1952 = vunpack.c.l.b16 %v1792
        %v1953 = vunpack.c.h.b16 %v1792
        %v1954 = vunpack.c.l.b16 %v1793
        %v1955 = vunpack.c.l.b16 %v1794
        %v1956 = vunpack.c.h.b16 %v1794
        %v1957 = vunpack.c.l.b16 %v1795
        %v1958 = vunpack.c.l.b16 %v1796
        %v1959 = vunpack.c.h.b16 %v1796
        %v1960 = vunpack.c.l.b16 %v1797
        %v1961 = vunpack.c.l.b16 %v1798
        %v1962 = vunpack.c.h.b16 %v1798
        %v1963 = vunpack.c.l.b16 %v1799
        %v1964 = vunpack.c.l.b16 %v1800
        %v1965 = vunpack.c.h.b16 %v1800
        %v1966 = vunpack.c.l.b16 %v1801
        %v1967 = vunpack.c.l.b16 %v1802
        %v1968 = vunpack.c.h.b16 %v1802
        %v1969 = vunpack.c.l.b16 %v1803
        %v1970 = vunpack.c.l.b16 %v1804
        %v1971 = vunpack.c.h.b16 %v1804
        %v1972 = vunpack.c.l.b16 %v1805
        %v1973 = vunpack.c.l.b16 %v1806
        %v1974 = vunpack.c.h.b16 %v1806
        %v1975 = vunpack.c.l.b16 %v1807
        %v1976 = vunpack.c.l.b16 %v1808
        %v1977 = vunpack.c.h.b16 %v1808
        %v1978 = vunpack.c.l.b16 %v1809
        %v1979 = vunpack.c.l.b16 %v1810
        %v1980 = vunpack.c.h.b16 %v1810
        %v1981 = vunpack.c.l.b16 %v1811
        %v1982 = vunpack.c.l.b16 %v1812
        %v1983 = vunpack.c.h.b16 %v1812
        %v1984 = vunpack.c.l.b16 %v1813
        %v1985 = vunpack.c.l.b16 %v1814
        %v1986 = vunpack.c.h.b16 %v1814
        %v1987 = vunpack.c.l.b16 %v1815
        %v1988 = vunpack.c.l.b16 %v1816
        %v1989 = vunpack.c.h.b16 %v1816
        %v1990 = vunpack.c.l.b16 %v1817
        %v1991 = vunpack.c.l.b16 %v1818
        %v1992 = vunpack.c.h.b16 %v1818
        %v1993 = vunpack.c.l.b16 %v1819
        %v1994 = vunpack.c.l.b16 %v1820
        %v1995 = vunpack.c.h.b16 %v1820
        %v1996 = vunpack.c.l.b16 %v1821
        %v1997 = vunpack.c.l.b16 %v1822
        %v1998 = vunpack.c.h.b16 %v1822
        %v1999 = vunpack.c.l.b16 %v1823
        %v2000 = vunpack.c.l.b16 %v1824
        %v2001 = vunpack.c.h.b16 %v1824
        %v2002 = vunpack.c.l.b16 %v1825
        %v2003 = vunpack.c.l.b16 %v1826
        %v2004 = vunpack.c.h.b16 %v1826
        %v2005 = vunpack.c.l.b16 %v1827
        %v2006 = vunpack.c.l.b16 %v1828
        %v2007 = vunpack.c.h.b16 %v1828
        %v2008 = vunpack.c.l.b16 %v1829
        %v2009 = vpack.c.b16 %v1916, %v1913
        %v2010 = vpack.c.b16 %v1917, %v1914
        %v2011 = vpack.c.b16 %v1918, %v1915
        %v2012 = vpack.c.b16 %v1922, %v1919
        %v2013 = vpack.c.b16 %v1923, %v1920
        %v2014 = vpack.c.b16 %v1924, %v1921
        %v2015 = vpack.c.b16 %v1928, %v1925
        %v2016 = vpack.c.b16 %v1929, %v1926
        %v2017 = vpack.c.b16 %v1930, %v1927
        %v2018 = vpack.c.b16 %v1934, %v1931
        %v2019 = vpack.c.b16 %v1935, %v1932
        %v2020 = vpack.c.b16 %v1936, %v1933
        %v2021 = vpack.c.b16 %v1940, %v1937
        %v2022 = vpack.c.b16 %v1941, %v1938
        %v2023 = vpack.c.b16 %v1942, %v1939
        %v2024 = vpack.c.b16 %v1946, %v1943
        %v2025 = vpack.c.b16 %v1947, %v1944
        %v2026 = vpack.c.b16 %v1948, %v1945
        %v2027 = vpack.c.b16 %v1952, %v1949
        %v2028 = vpack.c.b16 %v1953, %v1950
        %v2029 = vpack.c.b16 %v1954, %v1951
        %v2030 = vpack.c.b16 %v1958, %v1955
        %v2031 = vpack.c.b16 %v1959, %v1956
        %v2032 = vpack.c.b16 %v1960, %v1957
        %v2033 = vpack.c.b16 %v1964, %v1961
        %v2034 = vpack.c.b16 %v1965, %v1962
        %v2035 = vpack.c.b16 %v1966, %v1963
        %v2036 = vpack.c.b16 %v1970, %v1967
        %v2037 = vpack.c.b16 %v1971, %v1968
        %v2038 = vpack.c.b16 %v1972, %v1969
        %v2039 = vpack.c.b16 %v1976, %v1973
        %v2040 = vpack.c.b16 %v1977, %v1974
        %v2041 = vpack.c.b16 %v1978, %v1975
        %v2042 = vpack.c.b16 %v1982, %v1979
        %v2043 = vpack.c.b16 %v1983, %v1980
        %v2044 = vpack.c.b16 %v1984, %v1981
        %v2045 = vpack.c.b16 %v1988, %v1985
        %v2046 = vpack.c.b16 %v1989, %v1986
        %v2047 = vpack.c.b16 %v1990, %v1987
        %v2048 = vpack.c.b16 %v1994, %v1991
        %v2049 = vpack.c.b16 %v1995, %v1992
        %v2050 = vpack.c.b16 %v1996, %v1993
        %v2051 = vpack.c.b16 %v2000, %v1997
        %v2052 = vpack.c.b16 %v2001, %v1998
        %v2053 = vpack.c.b16 %v2002, %v1999
        %v2054 = vpack.c.b16 %v2006, %v2003
        %v2055 = vpack.c.b16 %v2007, %v2004
        %v2056 = vpack.c.b16 %v2008, %v2005
        %2105 = vmatprep.subr.bf16.mxu0 %v2010
        %2106 = vmatpush1.bf16.msra.mxu0 %v2009
        %2107 = vmatprep.subr.bf16.mxu0 %v2013
        %2108 = vmatpush1.bf16.msra.mxu0 %v2012
        %2109 = vmatprep.subr.bf16.mxu0 %v2016
        %2110 = vmatpush1.bf16.msra.mxu0 %v2015
        %2111 = vmatprep.subr.bf16.mxu0 %v2019
        %2112 = vmatpush1.bf16.msra.mxu0 %v2018
        %2113 = vmatprep.subr.bf16.mxu0 %v2022
        %2114 = vmatpush1.bf16.msra.mxu0 %v2021
        %2115 = vmatprep.subr.bf16.mxu0 %v2025
        %2116 = vmatpush1.bf16.msra.mxu0 %v2024
        %2117 = vmatprep.subr.bf16.mxu0 %v2028
        %2118 = vmatpush1.bf16.msra.mxu0 %v2027
        %2119 = vmatprep.subr.bf16.mxu0 %v2031
        %2120 = vmatpush1.bf16.msra.mxu0 %v2030
        %2121 = vmatprep.subr.bf16.mxu0 %v2034
        %2122 = vmatpush1.bf16.msra.mxu0 %v2033
        %2123 = vmatprep.subr.bf16.mxu0 %v2037
        %2124 = vmatpush1.bf16.msra.mxu0 %v2036
        %2125 = vmatprep.subr.bf16.mxu0 %v2040
        %2126 = vmatpush1.bf16.msra.mxu0 %v2039
        %2127 = vmatprep.subr.bf16.mxu0 %v2043
        %2128 = vmatpush1.bf16.msra.mxu0 %v2042
        %2129 = vmatprep.subr.bf16.mxu0 %v2046
        %2130 = vmatpush1.bf16.msra.mxu0 %v2045
        %2131 = vmatprep.subr.bf16.mxu0 %v2049
        %2132 = vmatpush1.bf16.msra.mxu0 %v2048
        %2133 = vmatprep.subr.bf16.mxu0 %v2052
        %2134 = vmatpush1.bf16.msra.mxu0 %v2051
        %2135 = vmatprep.subr.bf16.mxu0 %v2055
        %2136 = vmatpush1.bf16.msra.mxu0 %v2054
        %2137 = vmatprep.mubr.bf16.mxu0 %v1762
        %2138 = vmatmul.mubr.bf16.gmra.mrb[0].mxu0 %v1761
        %v2139 = vpop.f32.mrb[0].mxu0
        %v2140 = vadd.f32 %v1837, %v2139
        %v2141 = vpop.f32.mrb[0].mxu0
        %v2142 = vadd.f32 %v1841, %v2141
        %v2143 = vpop.f32.mrb[0].mxu0
        %v2144 = vadd.f32 %v1837, %v2143
        %v2145 = vpop.f32.mrb[0].mxu0
        %v2146 = vadd.f32 %v1841, %v2145
        %2147 = vdwg.mxu0
        %2148 = vmatprep.subr.bf16.mxu0 0
        %2149 = vmatpush1.bf16.msra.mxu0 %v2011
        %2150 = vmatprep.subr.bf16.mxu0 0
        %2151 = vmatpush1.bf16.msra.mxu0 %v2014
        %2152 = vmatprep.subr.bf16.mxu0 0
        %2153 = vmatpush1.bf16.msra.mxu0 %v2017
        %2154 = vmatprep.subr.bf16.mxu0 0
        %2155 = vmatpush1.bf16.msra.mxu0 %v2020
        %2156 = vmatprep.subr.bf16.mxu0 0
        %2157 = vmatpush1.bf16.msra.mxu0 %v2023
        %2158 = vmatprep.subr.bf16.mxu0 0
        %2159 = vmatpush1.bf16.msra.mxu0 %v2026
        %2160 = vmatprep.subr.bf16.mxu0 0
        %2161 = vmatpush1.bf16.msra.mxu0 %v2029
        %2162 = vmatprep.subr.bf16.mxu0 0
        %2163 = vmatpush1.bf16.msra.mxu0 %v2032
        %2164 = vmatprep.subr.bf16.mxu0 0
        %2165 = vmatpush1.bf16.msra.mxu0 %v2035
        %2166 = vmatprep.subr.bf16.mxu0 0
        %2167 = vmatpush1.bf16.msra.mxu0 %v2038
        %2168 = vmatprep.subr.bf16.mxu0 0
        %2169 = vmatpush1.bf16.msra.mxu0 %v2041
        %2170 = vmatprep.subr.bf16.mxu0 0
        %2171 = vmatpush1.bf16.msra.mxu0 %v2044
        %2172 = vmatprep.subr.bf16.mxu0 0
        %2173 = vmatpush1.bf16.msra.mxu0 %v2047
        %2174 = vmatprep.subr.bf16.mxu0 0
        %2175 = vmatpush1.bf16.msra.mxu0 %v2050
        %2176 = vmatprep.subr.bf16.mxu0 0
        %2177 = vmatpush1.bf16.msra.mxu0 %v2053
        %2178 = vmatprep.subr.bf16.mxu0 0
        %2179 = vmatpush1.bf16.msra.mxu0 %v2056
        %2180 = vmatprep.mubr.bf16.mxu0 %v1762
        %2181 = vmatmul.mubr.bf16.gmra.mrb[0].mxu0 %v1761
        %v2182 = vpop.f32.mrb[0].mxu0
        %v2183 = vadd.f32 %v1845, %v2182
        %v2184 = vpop.f32.mrb[0].mxu0
        %v2185 = vpop.f32.mrb[0].mxu0
        %v2186 = vadd.f32 %v1845, %v2185
        %v2187 = vpop.f32.mrb[0].mxu0
        %2188 = vdwg.mxu0
        %s2189 = scalar_lea.vmem %s11, %s1830
        %v2190 = vld [vmem:[%s2189] sm:$0x7]
        %vm2191 = vcmp.gt.f32.partialorder %v2190, 0.0
        %v2192 = vand.u32 2147483647, %v2140
        %v2193 = vand.u32 2147483647, %v2142
        %v2194 = vand.u32 2147483647, %v2183
        %v2195 = vand.u32 2147483647, %v2144
        %v2196 = vand.u32 2147483647, %v2146
        %v2197 = vand.u32 2147483647, %v2186
        %v2198 = vsel %vm2191, 1, 0
        %v2199 = vlaneseq
        %v2200 = vshrl.u32 %v2199, 7
        %v2201 = vsub.s32 0, %v2200
        %v2202 = vrot.slane %v2198, %v2201
        %v2203 = vlaneseq
        %v2204 = vshrl.u32 %v2203, 7
        %v2205 = vsub.s32 1, %v2204
        %v2206 = vrot.slane %v2198, %v2205
        %v2207 = vlaneseq
        %v2208 = vshrl.u32 %v2207, 7
        %v2209 = vsub.s32 2, %v2208
        %v2210 = vrot.slane %v2198, %v2209
        %vm2211 = vcmp.eq.s32.totalorder %v2202, 1
        %vm2212 = vcmp.eq.s32.totalorder %v2206, 1
        %vm2213 = vcmp.eq.s32.totalorder %v2210, 1
        %v2214 = vsel %vm2211, %v2192, %v2140
        %v2215 = vsel %vm2212, %v2193, %v2142
        %v2216 = vsel %vm2213, %v2194, %v2183
        %v2217 = vsel %vm2211, %v2195, %v2144
        %v2218 = vsel %vm2212, %v2196, %v2146
        %v2219 = vsel %vm2213, %v2197, %v2186
        %v2220 = vpack.c.bf16 %v2217, %v2214
        %v2221 = vpack.c.bf16 %v2218, %v2215
        %v2222 = vpack.c.bf16 %v2219, %v2216
        %v2226 = vunpack.c.l.b16 %v2220
        %v2227 = vunpack.c.l.b16 %v2221
        %v2228 = vunpack.c.l.b16 %v2222
        %v2229 = vunpack.c.h.b16 %v2220
        %v2230 = vunpack.c.h.b16 %v2221
        %v2231 = vunpack.c.h.b16 %v2222
        %v2232 = vpack.c.b16 %v2227, %v2226
        %v2233 = vpack.c.b16 %v2228, %v2228
        %v2234 = vpack.c.b16 %v2230, %v2229
        %v2235 = vpack.c.b16 %v2231, %v2231
        %2240 = vst [vmem:[%s581] sm:$0xff] %v2232
        %2241 = vst [vmem:[%s581 + $0x8] sm:$0xf] %v2233
        %2242 = vst [vmem:[%s581 + $0xc] sm:$0xff] %v2234
        %2243 = vst [vmem:[%s581 + $0x14] sm:$0xf] %v2235
        %s2244 = sand.u32 %s315, 1
        %s2245 = scalar_lea.sflag [#allocation4], %s2244
        %s2246 = sand.u32 %s315, 1
        %s2247 = smul.addr %s2246, 24
        %s2248 = scalar_lea.vmem [#allocation19], %s2247
        // Predicated region
        $region109: #{tpu_custom_call.1} parent=67 // pred_check
          %p2249 = pneg %p325
        $region110: #{tpu_custom_call.1} parent=67 // pred_check_branch
          %2251 = sbr.rel (%p2249) target = $region112
        $region111: #{tpu_custom_call.1} parent=67 // pred_region
          %s2252 = smul.u32 2, %s39
          %s2254 = ssub.s32 384, 384
          %2255 = vsyncadd %s2245, %s2254
          %s2256 = smul.addr %s2252, 3
          %s2257 = smul.addr %s38, 6
          %s2258 = sadd.s32 %s2256, %s2257
          %s2259 = smul.addr %s2258, 64
          %s2260 = scalar_lea.hbm %s12, %s2259
          %s2261 = sshll.u32 %s2248, 4
          %s2262 = int_to_ptr.vmem [resolvable:$true] %s2261
          %2267 = dma.vmem_to_hbm [thread:$0]  %s2262, 384, %s2260, %s2245, 192, 192, 12
        $region112: #{tpu_custom_call.1} parent=67 // pred_fallthru
          _
      $region68: #{tpu_custom_call.1} parent=5 // pred_fallthru
        _
      %p2268 = scmp.le.s32.totalorder 2, %s29
      // Predicated region
      $region113: #{tpu_custom_call.1} parent=5 // pred_check
        %p2269 = pneg %p2268
      $region114: #{tpu_custom_call.1} parent=5 // pred_check_branch
        %2271 = sbr.rel (%p2269) target = $region116
      $region115: #{tpu_custom_call.1} parent=5 // pred_region
        %s2272 = ssub.s32 %s29, 2
        // Predicated region
        $region117: #{tpu_custom_call.1} parent=115 // pred_check
          %p2273 = pneg %p331
        $region118: #{tpu_custom_call.1} parent=115 // pred_check_branch
          %2275 = sbr.rel (%p2273) target = $region120
        $region119: #{tpu_custom_call.1} parent=115 // pred_region
          %s2276 = sand.u32 %s316, 1
          %s2277 = scalar_lea.sflag [#allocation4], %s2276
          %s2278 = sand.u32 %s316, 1
          %s2279 = smul.addr %s2278, 24
          %s2280 = scalar_lea.vmem [#allocation19], %s2279
          %2281 = dma.done %s2277, 384
        $region120: #{tpu_custom_call.1} parent=115 // pred_fallthru
          _
      $region116: #{tpu_custom_call.1} parent=5 // pred_fallthru
        _
    $region6: #{tpu_custom_call.1} parent=1 // loop_footer
      %s33 = sadd.s32 1, %s29
    $region7: #{tpu_custom_call.1} parent=1 // loop_footer_branch
      %28 = sbr.rel target = $region3
    $region8: #{tpu_custom_call.1} parent=1 // loop_exit
      _
    %2282 = vsyncpa [#allocation3], 1
    %s2283 = scalar_lea.sflag [#allocation3], 1
    %2284 = vsyncpa %s2283, 1
    %2285 = vsyncpa [#allocation6], 1
    %2286 = vsyncpa [#allocation9], 1
    %2287 = vsyncpa [#allocation12], 1
    %2288 = vsyncpa [#allocation15], 1
    %2289 = vsyncpa [#allocation18], 1
    %2290 = vsyncpa [#allocation4], 1
    %s2291 = scalar_lea.sflag [#allocation4], 1
    %2292 = vsyncpa %s2291, 1

</llo_original>
